<compile_context>
chip_gen: v7x
topology: tpu7x:2x2x1
jax: 0.10.0
libtpu: 0.0.40
codegen_flags: <defaults>
</compile_context>

<pallas_src>
import functools

import jax
import jax.numpy as jnp
from jax.experimental import pallas as pl
from jax.experimental.pallas import tpu as pltpu


def _round_up(x, m):
    return (x + m - 1) // m * m


# ---------------------------------------------------------------------------
# Tiled matmul + bias (+ReLU) kernel   (im2col conv backend)
# ---------------------------------------------------------------------------

def _mm_kernel(a_ref, b_ref, bias_ref, o_ref, acc_ref, *, relu):
    @pl.when(pl.program_id(2) == 0)
    def _init():
        acc_ref[...] = jnp.zeros_like(acc_ref)

    acc_ref[...] += jnp.dot(a_ref[...], b_ref[...],
                            preferred_element_type=jnp.float32)

    @pl.when(pl.program_id(2) == pl.num_programs(2) - 1)
    def _finalize():
        r = acc_ref[...] + bias_ref[...]
        if relu:
            r = jnp.maximum(r, 0.0)
        o_ref[...] = r.astype(o_ref.dtype)


def matmul_bias(a, b, bias, *, relu=False, tm=256, tn=128, tk=256):
    """(M, K) @ (K, N) + bias, optional ReLU.  bf16 operands, f32 accumulate.

    Inputs are zero-padded to tile multiples (N up to a 128 multiple so the
    output stores are lane-dense); the wrapper slices the result back.
    """
    M, K = a.shape
    _, N = b.shape

    tm = min(tm, _round_up(M, 8))     # 128-lane / 8-sublane aligned tiles
    tn = min(tn, _round_up(N, 128))
    tk = min(tk, _round_up(K, 128))
    Mp, Kp, Np = _round_up(M, tm), _round_up(K, tk), _round_up(N, tn)

    a_p = jnp.pad(a.astype(jnp.bfloat16), ((0, Mp - M), (0, Kp - K)))
    b_p = jnp.pad(b.astype(jnp.bfloat16), ((0, Kp - K), (0, Np - N)))
    bias_p = jnp.pad(bias.astype(jnp.float32).reshape(1, N),
                     ((0, 0), (0, Np - N)))

    grid = (Mp // tm, Np // tn, Kp // tk)
    out = pl.pallas_call(
        functools.partial(_mm_kernel, relu=relu),
        grid=grid,
        out_shape=jax.ShapeDtypeStruct((Mp, Np), jnp.float32),
        in_specs=[pl.BlockSpec((tm, tk), lambda i, j, k: (i, k)),
                  pl.BlockSpec((tk, tn), lambda i, j, k: (k, j)),
                  pl.BlockSpec((1, tn), lambda i, j, k: (0, j))],
        out_specs=pl.BlockSpec((tm, tn), lambda i, j, k: (i, j)),
        scratch_shapes=[pltpu.VMEM((tm, tn), jnp.float32)],
        compiler_params=pltpu.CompilerParams(
            dimension_semantics=("parallel", "parallel", "arbitrary"),
            vmem_limit_bytes=32 * 1024 * 1024),
    )(a_p, b_p, bias_p)
    return out[:M, :N]


def conv2d_nhwc(x, w, b, stride=1, pad=0, relu=False):
    """NHWC conv via patches (plain-JAX glue) + Pallas tiled matmul.

    x: (B, H, W, Cin);  w: (Cout, Cin, KH, KW) torch layout;  b: (Cout,).
    conv_general_dilated_patches orders the patch features channel-major
    (c*KH*KW + kh*KW + kw), matching w.reshape(Cout, Cin*KH*KW).
    """
    B = x.shape[0]
    Cout, Cin, KH, KW = w.shape
    patches = jax.lax.conv_general_dilated_patches(
        x, (KH, KW), (stride, stride), ((pad, pad), (pad, pad)),
        dimension_numbers=("NHWC", "HWIO", "NHWC"))
    _, OH, OW, Kdim = patches.shape
    cols = patches.reshape(B * OH * OW, Kdim)
    wmat = w.reshape(Cout, Cin * KH * KW).T              # (K, Cout)
    out = matmul_bias(cols, wmat, b, relu=relu)
    return out.reshape(B, OH, OW, Cout)


# ---------------------------------------------------------------------------
# Fused FeatureCorrelation + KNNGeometric kernel
# ---------------------------------------------------------------------------

def _corr_knn_kernel(fa_ref, fbt_ref, lbl_ref, o_ref, *, K):
    fa = fa_ref[0]          # (HWA, C)   bf16  -- label-source features
    fbt = fbt_ref[0]        # (C, TCOL)  bf16  -- label-target features (col tile)
    lbl = lbl_ref[0]        # (CL, HWA)  f32

    # Correlation tile, kept on-chip only.
    corr = jnp.dot(fa, fbt, preferred_element_type=jnp.float32)   # (HWA, TCOL)
    HWA, TCOL = corr.shape
    row_iota = jax.lax.broadcasted_iota(jnp.int32, (HWA, TCOL), 0)
    neg = jnp.float32(-1e30)

    # Build a 0/1 top-K selection mask per column (tie-break: smallest index).
    def body(_, carry):
        work, sel = carry
        mx = jnp.max(work, axis=0, keepdims=True)                    # (1, TCOL)
        idx = jnp.min(jnp.where(work == mx, row_iota, HWA),
                      axis=0, keepdims=True)                         # (1, TCOL)
        hit = row_iota == idx                                        # (HWA, TCOL)
        sel = jnp.where(hit, 1.0, sel)
        work = jnp.where(hit, neg, work)
        return work, sel

    _, sel = jax.lax.fori_loop(0, K, body,
                               (corr, jnp.zeros_like(corr)), unroll=True)

    # Single matmul: sum_{k in topK(j)} lbl[:, k] * corr[k, j]
    o_ref[0] = jnp.dot(lbl, sel * corr, preferred_element_type=jnp.float32)


def corr_knn(feat_a, feat_b, lbl_a, K, tcol=512):
    """Propagate lbl_a (aligned with feat_a) onto feat_b positions.

    feat_a, feat_b: (B, H, W, C) NHWC, L2-normalized.  lbl_a: (B, CL, H, W).
    Returns (B, CL, H, W).  The (HW, HW) correlation never hits HBM; its
    column axis is tiled on the grid (tcol <= 512 keeps v7x VMEM-safe).
    """
    B, H, W, C = feat_a.shape
    HW = H * W
    CL = lbl_a.shape[1]

    fa = feat_a.reshape(B, HW, C).astype(jnp.bfloat16)                 # (B, HWA, C)
    fbt = feat_b.reshape(B, HW, C).transpose(0, 2, 1).astype(jnp.bfloat16)  # (B, C, HWB)
    lbl = lbl_a.reshape(B, CL, HW).astype(jnp.float32)

    tcol = min(tcol, HW)
    if HW % tcol:
        tcol = HW

    out = pl.pallas_call(
        functools.partial(_corr_knn_kernel, K=K),
        grid=(B, HW // tcol),
        out_shape=jax.ShapeDtypeStruct((B, CL, HW), jnp.float32),
        in_specs=[pl.BlockSpec((1, HW, C), lambda b, j: (b, 0, 0)),
                  pl.BlockSpec((1, C, tcol), lambda b, j: (b, 0, j)),
                  pl.BlockSpec((1, CL, HW), lambda b, j: (b, 0, 0))],
        out_specs=pl.BlockSpec((1, CL, tcol), lambda b, j: (b, 0, j)),
        compiler_params=pltpu.CompilerParams(
            dimension_semantics=("parallel", "parallel"),
            vmem_limit_bytes=32 * 1024 * 1024),
    )(fa, fbt, lbl)
    return out.reshape(B, CL, H, W)


# ---------------------------------------------------------------------------
# SPNet forward
# ---------------------------------------------------------------------------

def _bilinear_up(x_nchw, size):
    # F.interpolate(x, size, mode='bilinear', align_corners=False)
    return jax.image.resize(
        x_nchw, (x_nchw.shape[0], x_nchw.shape[1], size, size), method="bilinear")


def spnet_forward(params, src_img, tar_img, src_lbl, tar_lbl, K):
    input_size = src_img.shape[-1]
    B = src_img.shape[0]

    # NCHW -> NHWC once; src & tar stacked so every conv stage is ONE call.
    imgs = jnp.concatenate([src_img, tar_img], axis=0).transpose(0, 2, 3, 1)

    # CommonFeatureExtraction proxy (backbone through layer3; see TODO above).
    com = conv2d_nhwc(imgs, params["cfe_w"], params["cfe_b"],
                      stride=4, pad=1, relu=True)
    # SegFeatureExtraction / SegFeatureClassification / MatFeatureExtraction.
    seg_fea = conv2d_nhwc(com, params["sfe_w"], params["sfe_b"],
                          stride=1, pad=1, relu=True)
    seg_lbl = conv2d_nhwc(seg_fea, params["sfc_w"], params["sfc_b"],
                          stride=1, pad=0, relu=False)
    mat_fea = conv2d_nhwc(com, params["mfe_w"], params["mfe_b"],
                          stride=1, pad=1, relu=False)
    mat_fea = mat_fea / jnp.maximum(
        jnp.sqrt(jnp.sum(mat_fea * mat_fea, axis=-1, keepdims=True)), 1e-12)

    src_seg_lbl, tar_seg_lbl = seg_lbl[:B], seg_lbl[B:]
    src_pro, tar_pro = mat_fea[:B], mat_fea[B:]
    Hf, Wf = src_pro.shape[1], src_pro.shape[2]

    # Nearest-neighbor label downsample to feature resolution (integer factor).
    sh = src_lbl.shape[2] // Hf
    sw = src_lbl.shape[3] // Wf
    src_lbl_ds = src_lbl[:, :, ::sh, ::sw]
    tar_lbl_ds = tar_lbl[:, :, ::sh, ::sw]

    # Both propagation directions batched through ONE fused corr+KNN call.
    fa = jnp.concatenate([src_pro, tar_pro], axis=0)      # label sources
    fb = jnp.concatenate([tar_pro, src_pro], axis=0)      # label targets
    la = jnp.concatenate([src_lbl_ds, tar_lbl_ds], axis=0)
    pro = corr_knn(fa, fb, la, K)                          # (2B, CL, Hf, Wf)
    tar_pro_lbl, src_pro_lbl = pro[:B], pro[B:]

    src_seg_lbl = src_seg_lbl.transpose(0, 3, 1, 2)        # NHWC -> NCHW
    tar_seg_lbl = tar_seg_lbl.transpose(0, 3, 1, 2)

    return (_bilinear_up(src_seg_lbl, input_size),
            _bilinear_up(tar_seg_lbl, input_size),
            _bilinear_up(src_pro_lbl, input_size),
            _bilinear_up(tar_pro_lbl, input_size))


# ---------------------------------------------------------------------------
# Main
# ---------------------------------------------------------------------------

if __name__ == "__main__":
    B, Cin, S = 2, 3, 32          # input images (NCHW)
    K = 4                         # KNN neighbours
    num_classes = 5
    C_com, C_seg, C_pro = 8, 16, 16

    key = jax.random.PRNGKey(0)
    ks = jax.random.split(key, 12)

    params = {
        "cfe_w": 0.1 * jax.random.normal(ks[0], (C_com, Cin, 3, 3), jnp.float32),
        "cfe_b": 0.1 * jax.random.normal(ks[1], (C_com,), jnp.float32),
        "sfe_w": 0.1 * jax.random.normal(ks[2], (C_seg, C_com, 3, 3), jnp.float32),
        "sfe_b": 0.1 * jax.random.normal(ks[3], (C_seg,), jnp.float32),
        "sfc_w": 0.1 * jax.random.normal(ks[4], (num_classes, C_seg, 1, 1), jnp.float32),
        "sfc_b": 0.1 * jax.random.normal(ks[5], (num_classes,), jnp.float32),
        "mfe_w": 0.1 * jax.random.normal(ks[6], (C_pro, C_com, 3, 3), jnp.float32),
        "mfe_b": 0.1 * jax.random.normal(ks[7], (C_pro,), jnp.float32),
    }

    src_img = jax.random.normal(ks[8], (B, Cin, S, S), jnp.float32)
    tar_img = jax.random.normal(ks[9], (B, Cin, S, S), jnp.float32)
    src_lbl = jax.nn.softmax(
        jax.random.normal(ks[10], (B, num_classes, S, S), jnp.float32), axis=1)
    tar_lbl = jax.nn.softmax(
        jax.random.normal(ks[11], (B, num_classes, S, S), jnp.float32), axis=1)

    fwd = jax.jit(functools.partial(spnet_forward, K=K))
    outs = fwd(params, src_img, tar_img, src_lbl, tar_lbl)
    outs = jax.block_until_ready(outs)

    expected = (B, num_classes, S, S)
    assert all(o.shape == expected for o in outs), [o.shape for o in outs]
    assert all(bool(jnp.all(jnp.isfinite(o))) for o in outs)
    print("KERNEL_OK")
</pallas_src>

<mosaic_0001>
module attributes {stable_mosaic.version = 11 : i64} {
  func.func @_mm_kernel(%arg0: i32, %arg1: i32, %arg2: i32, %arg3: memref<256x128xbf16, #tpu.memory_space<vmem>>, %arg4: memref<128x128xbf16, #tpu.memory_space<vmem>>, %arg5: memref<1x128xf32, #tpu.memory_space<vmem>>, %arg6: memref<256x128xf32, #tpu.memory_space<vmem>>, %arg7: memref<256x128xf32, #tpu.memory_space<vmem>>) attributes {dimension_semantics = [#tpu.dimension_semantics<parallel>, #tpu.dimension_semantics<parallel>, #tpu.dimension_semantics<arbitrary>], iteration_bounds = array<i64: 1, 1, 1>, scalar_prefetch = 0 : i64, scratch_operands = 1 : i64, tpu.core_type = #tpu.core_type<tc>, window_params = [{transform_indices = @transform_0, window_bounds = array<i64: 256, 128>}, {transform_indices = @transform_1, window_bounds = array<i64: 128, 128>}, {transform_indices = @transform_2, window_bounds = array<i64: 1, 128>}, {transform_indices = @transform_3, window_bounds = array<i64: 256, 128>}]} {
    %c0_i32 = arith.constant 0 : i32
    %0 = arith.cmpi eq, %arg2, %c0_i32 : i32
    %1 = arith.extui %0 : i1 to i32
    %c0_i32_0 = arith.constant 0 : i32
    %2 = arith.cmpi ne, %1, %c0_i32_0 : i32
    scf.if %2 {
      %cst_10 = arith.constant 0.000000e+00 : f32
      %12 = vector.broadcast %cst_10 : f32 to vector<256x128xf32>
      %c0_11 = arith.constant 0 : index
      %c0_12 = arith.constant 0 : index
      %13 = vector.load %arg7[%c0_11, %c0_12] : memref<256x128xf32, #tpu.memory_space<vmem>>, vector<256x128xf32>
      tpu.vector_store %arg7[%c0_11, %c0_12], %12 {strides = array<i32>} : memref<256x128xf32, #tpu.memory_space<vmem>>, vector<256x128xf32>,
    } else {
    }
    %c0 = arith.constant 0 : index
    %c0_1 = arith.constant 0 : index
    %3 = vector.load %arg7[%c0, %c0_1] : memref<256x128xf32, #tpu.memory_space<vmem>>, vector<256x128xf32>
    %c0_2 = arith.constant 0 : index
    %c0_3 = arith.constant 0 : index
    %4 = vector.load %arg3[%c0_2, %c0_3] : memref<256x128xbf16, #tpu.memory_space<vmem>>, vector<256x128xbf16>
    %c0_4 = arith.constant 0 : index
    %c0_5 = arith.constant 0 : index
    %5 = vector.load %arg4[%c0_4, %c0_5] : memref<128x128xbf16, #tpu.memory_space<vmem>>, vector<128x128xbf16>
    %cst = arith.constant dense<0.000000e+00> : vector<256x128xf32>
    %6 = tpu.matmul %4, %5, %cst {dimension_numbers = #tpu.dot_dimension_numbers<[1], [0], [0], [1], [0, 0, 1, 1], [], []>} : vector<256x128xbf16>, vector<128x128xbf16>, vector<256x128xf32> -> vector<256x128xf32>
    %7 = arith.addf %3, %6 : vector<256x128xf32>
    %c0_6 = arith.constant 0 : index
    %c0_7 = arith.constant 0 : index
    %8 = vector.load %arg7[%c0_6, %c0_7] : memref<256x128xf32, #tpu.memory_space<vmem>>, vector<256x128xf32>
    tpu.vector_store %arg7[%c0_6, %c0_7], %7 {strides = array<i32>} : memref<256x128xf32, #tpu.memory_space<vmem>>, vector<256x128xf32>,
    %c0_i32_8 = arith.constant 0 : i32
    %9 = arith.cmpi eq, %arg2, %c0_i32_8 : i32
    %10 = arith.extui %9 : i1 to i32
    %c0_i32_9 = arith.constant 0 : i32
    %11 = arith.cmpi ne, %10, %c0_i32_9 : i32
    scf.if %11 {
      %c0_10 = arith.constant 0 : index
      %c0_11 = arith.constant 0 : index
      %12 = vector.load %arg7[%c0_10, %c0_11] : memref<256x128xf32, #tpu.memory_space<vmem>>, vector<256x128xf32>
      %c0_12 = arith.constant 0 : index
      %c0_13 = arith.constant 0 : index
      %13 = vector.load %arg5[%c0_12, %c0_13] : memref<1x128xf32, #tpu.memory_space<vmem>>, vector<1x128xf32>
      %14 = vector.broadcast %13 : vector<1x128xf32> to vector<256x128xf32>
      %15 = arith.addf %12, %14 : vector<256x128xf32>
      %cst_14 = arith.constant 0.000000e+00 : f32
      %16 = vector.broadcast %cst_14 : f32 to vector<256x128xf32>
      %17 = arith.maximumf %15, %16 : vector<256x128xf32>
      %c0_15 = arith.constant 0 : index
      %c0_16 = arith.constant 0 : index
      %18 = vector.load %arg6[%c0_15, %c0_16] : memref<256x128xf32, #tpu.memory_space<vmem>>, vector<256x128xf32>
      tpu.vector_store %arg6[%c0_15, %c0_16], %17 {strides = array<i32>} : memref<256x128xf32, #tpu.memory_space<vmem>>, vector<256x128xf32>,
    } else {
    }
    return
  }
  func.func @transform_0(%arg0: i32, %arg1: i32, %arg2: i32) -> (i32, i32) {
    %c0_i32 = arith.constant 0 : i32
    return %arg0, %arg2 : i32, i32
  }
  func.func @transform_1(%arg0: i32, %arg1: i32, %arg2: i32) -> (i32, i32) {
    %c0_i32 = arith.constant 0 : i32
    return %arg2, %arg1 : i32, i32
  }
  func.func @transform_2(%arg0: i32, %arg1: i32, %arg2: i32) -> (i32, i32) {
    %c0_i32 = arith.constant 0 : i32
    %c0_i32_0 = arith.constant 0 : i32
    return %c0_i32, %arg1 : i32, i32
  }
  func.func @transform_3(%arg0: i32, %arg1: i32, %arg2: i32) -> (i32, i32) {
    %c0_i32 = arith.constant 0 : i32
    return %arg0, %arg1 : i32, i32
  }
}

module attributes {stable_mosaic.version = 11 : i64} {
  func.func @_mm_kernel(%arg0: i32, %arg1: i32, %arg2: i32, %arg3: memref<256x128xbf16, #tpu.memory_space<vmem>>, %arg4: memref<128x128xbf16, #tpu.memory_space<vmem>>, %arg5: memref<1x128xf32, #tpu.memory_space<vmem>>, %arg6: memref<256x128xf32, #tpu.memory_space<vmem>>, %arg7: memref<256x128xf32, #tpu.memory_space<vmem>>) attributes {dimension_semantics = [#tpu.dimension_semantics<parallel>, #tpu.dimension_semantics<parallel>, #tpu.dimension_semantics<arbitrary>], iteration_bounds = array<i64: 1, 1, 1>, scalar_prefetch = 0 : i64, scratch_operands = 1 : i64, tpu.core_type = #tpu.core_type<tc>, window_params = [{transform_indices = @transform_0, window_bounds = array<i64: 256, 128>}, {transform_indices = @transform_1, window_bounds = array<i64: 128, 128>}, {transform_indices = @transform_2, window_bounds = array<i64: 1, 128>}, {transform_indices = @transform_3, window_bounds = array<i64: 256, 128>}]} {
    %c0_i32 = arith.constant 0 : i32
    %0 = arith.cmpi eq, %arg2, %c0_i32 : i32
    %1 = arith.extui %0 : i1 to i32
    %c0_i32_0 = arith.constant 0 : i32
    %2 = arith.cmpi ne, %1, %c0_i32_0 : i32
    scf.if %2 {
      %cst_10 = arith.constant 0.000000e+00 : f32
      %12 = vector.broadcast %cst_10 : f32 to vector<256x128xf32>
      %c0_11 = arith.constant 0 : index
      %c0_12 = arith.constant 0 : index
      %13 = vector.load %arg7[%c0_11, %c0_12] : memref<256x128xf32, #tpu.memory_space<vmem>>, vector<256x128xf32>
      tpu.vector_store %arg7[%c0_11, %c0_12], %12 {strides = array<i32>} : memref<256x128xf32, #tpu.memory_space<vmem>>, vector<256x128xf32>,
    } else {
    }
    %c0 = arith.constant 0 : index
    %c0_1 = arith.constant 0 : index
    %3 = vector.load %arg7[%c0, %c0_1] : memref<256x128xf32, #tpu.memory_space<vmem>>, vector<256x128xf32>
    %c0_2 = arith.constant 0 : index
    %c0_3 = arith.constant 0 : index
    %4 = vector.load %arg3[%c0_2, %c0_3] : memref<256x128xbf16, #tpu.memory_space<vmem>>, vector<256x128xbf16>
    %c0_4 = arith.constant 0 : index
    %c0_5 = arith.constant 0 : index
    %5 = vector.load %arg4[%c0_4, %c0_5] : memref<128x128xbf16, #tpu.memory_space<vmem>>, vector<128x128xbf16>
    %cst = arith.constant dense<0.000000e+00> : vector<256x128xf32>
    %6 = tpu.matmul %4, %5, %cst {dimension_numbers = #tpu.dot_dimension_numbers<[1], [0], [0], [1], [0, 0, 1, 1], [], []>} : vector<256x128xbf16>, vector<128x128xbf16>, vector<256x128xf32> -> vector<256x128xf32>
    %7 = arith.addf %3, %6 : vector<256x128xf32>
    %c0_6 = arith.constant 0 : index
    %c0_7 = arith.constant 0 : index
    %8 = vector.load %arg7[%c0_6, %c0_7] : memref<256x128xf32, #tpu.memory_space<vmem>>, vector<256x128xf32>
    tpu.vector_store %arg7[%c0_6, %c0_7], %7 {strides = array<i32>} : memref<256x128xf32, #tpu.memory_space<vmem>>, vector<256x128xf32>,
    %c0_i32_8 = arith.constant 0 : i32
    %9 = arith.cmpi eq, %arg2, %c0_i32_8 : i32
    %10 = arith.extui %9 : i1 to i32
    %c0_i32_9 = arith.constant 0 : i32
    %11 = arith.cmpi ne, %10, %c0_i32_9 : i32
    scf.if %11 {
      %c0_10 = arith.constant 0 : index
      %c0_11 = arith.constant 0 : index
      %12 = vector.load %arg7[%c0_10, %c0_11] : memref<256x128xf32, #tpu.memory_space<vmem>>, vector<256x128xf32>
      %c0_12 = arith.constant 0 : index
      %c0_13 = arith.constant 0 : index
      %13 = vector.load %arg5[%c0_12, %c0_13] : memref<1x128xf32, #tpu.memory_space<vmem>>, vector<1x128xf32>
      %14 = vector.broadcast %13 : vector<1x128xf32> to vector<256x128xf32>
      %15 = arith.addf %12, %14 : vector<256x128xf32>
      %c0_14 = arith.constant 0 : index
      %c0_15 = arith.constant 0 : index
      %16 = vector.load %arg6[%c0_14, %c0_15] : memref<256x128xf32, #tpu.memory_space<vmem>>, vector<256x128xf32>
      tpu.vector_store %arg6[%c0_14, %c0_15], %15 {strides = array<i32>} : memref<256x128xf32, #tpu.memory_space<vmem>>, vector<256x128xf32>,
    } else {
    }
    return
  }
  func.func @transform_0(%arg0: i32, %arg1: i32, %arg2: i32) -> (i32, i32) {
    %c0_i32 = arith.constant 0 : i32
    return %arg0, %arg2 : i32, i32
  }
  func.func @transform_1(%arg0: i32, %arg1: i32, %arg2: i32) -> (i32, i32) {
    %c0_i32 = arith.constant 0 : i32
    return %arg2, %arg1 : i32, i32
  }
  func.func @transform_2(%arg0: i32, %arg1: i32, %arg2: i32) -> (i32, i32) {
    %c0_i32 = arith.constant 0 : i32
    %c0_i32_0 = arith.constant 0 : i32
    return %c0_i32, %arg1 : i32, i32
  }
  func.func @transform_3(%arg0: i32, %arg1: i32, %arg2: i32) -> (i32, i32) {
    %c0_i32 = arith.constant 0 : i32
    return %arg0, %arg1 : i32, i32
  }
}

module attributes {stable_mosaic.version = 11 : i64} {
  func.func @_corr_knn_kernel(%arg0: i32, %arg1: i32, %arg2: memref<1x64x16xbf16, #tpu.memory_space<vmem>>, %arg3: memref<1x16x64xbf16, #tpu.memory_space<vmem>>, %arg4: memref<1x5x64xf32, #tpu.memory_space<vmem>>, %arg5: memref<1x5x64xf32, #tpu.memory_space<vmem>>) attributes {dimension_semantics = [#tpu.dimension_semantics<parallel>, #tpu.dimension_semantics<parallel>], iteration_bounds = array<i64: 4, 1>, scalar_prefetch = 0 : i64, scratch_operands = 0 : i64, tpu.core_type = #tpu.core_type<tc>, window_params = [{transform_indices = @transform_0, window_bounds = array<i64: 1, 64, 16>}, {transform_indices = @transform_1, window_bounds = array<i64: 1, 16, 64>}, {transform_indices = @transform_2, window_bounds = array<i64: 1, 5, 64>}, {transform_indices = @transform_3, window_bounds = array<i64: 1, 5, 64>}]} {
    %c0 = arith.constant 0 : index
    %c0_0 = arith.constant 0 : index
    %c0_1 = arith.constant 0 : index
    %0 = vector.load %arg2[%c0, %c0_0, %c0_1] : memref<1x64x16xbf16, #tpu.memory_space<vmem>>, vector<1x64x16xbf16>
    %1 = vector.shape_cast %0 : vector<1x64x16xbf16> to vector<64x16xbf16>
    %c0_2 = arith.constant 0 : index
    %c0_3 = arith.constant 0 : index
    %c0_4 = arith.constant 0 : index
    %2 = vector.load %arg3[%c0_2, %c0_3, %c0_4] : memref<1x16x64xbf16, #tpu.memory_space<vmem>>, vector<1x16x64xbf16>
    %3 = vector.shape_cast %2 : vector<1x16x64xbf16> to vector<16x64xbf16>
    %c0_5 = arith.constant 0 : index
    %c0_6 = arith.constant 0 : index
    %c0_7 = arith.constant 0 : index
    %4 = vector.load %arg4[%c0_5, %c0_6, %c0_7] : memref<1x5x64xf32, #tpu.memory_space<vmem>>, vector<1x5x64xf32>
    %5 = vector.shape_cast %4 : vector<1x5x64xf32> to vector<5x64xf32>
    %cst = arith.constant dense<0.000000e+00> : vector<64x64xf32>
    %6 = tpu.matmul %1, %3, %cst {dimension_numbers = #tpu.dot_dimension_numbers<[1], [0], [0], [1], [0, 0, 1, 1], [], []>} : vector<64x16xbf16>, vector<16x64xbf16>, vector<64x64xf32> -> vector<64x64xf32>
    %7 = tpu.iota {dimensions = array<i32: 0>} : vector<64x64xi32>
    %cst_8 = arith.constant 0.000000e+00 : f32
    %8 = vector.broadcast %cst_8 : f32 to vector<64x64xf32>
    %cst_9 = arith.constant -1.000000e+30 : f32
    %c0_i32 = arith.constant 0 : i32
    %cst_10 = arith.constant dense<0xFF800000> : vector<64xf32>
    %9 = vector.multi_reduction <maximumf>, %6, %cst_10 [0] : vector<64x64xf32> to vector<64xf32>
    %10 = vector.shape_cast %9 : vector<64xf32> to vector<1x64xf32>
    %11 = vector.broadcast %10 : vector<1x64xf32> to vector<64x64xf32>
    %12 = arith.cmpf oeq, %6, %11 : vector<64x64xf32>
    %c64_i32 = arith.constant 64 : i32
    %13 = vector.broadcast %c64_i32 : i32 to vector<64x64xi32>
    %14 = arith.select %12, %7, %13 : vector<64x64xi1>, vector<64x64xi32>
    %cst_11 = arith.constant dense<2147483647> : vector<64xi32>
    %15 = vector.multi_reduction <minsi>, %14, %cst_11 [0] : vector<64x64xi32> to vector<64xi32>
    %16 = vector.shape_cast %15 : vector<64xi32> to vector<1x64xi32>
    %17 = vector.broadcast %16 : vector<1x64xi32> to vector<64x64xi32>
    %18 = arith.cmpi eq, %7, %17 : vector<64x64xi32>
    %cst_12 = arith.constant 1.000000e+00 : f32
    %19 = vector.broadcast %cst_12 : f32 to vector<64x64xf32>
    %20 = arith.select %18, %19, %8 : vector<64x64xi1>, vector<64x64xf32>
    %21 = vector.broadcast %cst_9 : f32 to vector<64x64xf32>
    %22 = arith.select %18, %21, %6 : vector<64x64xi1>, vector<64x64xf32>
    %c1_i32 = arith.constant 1 : i32
    %cst_13 = arith.constant dense<0xFF800000> : vector<64xf32>
    %23 = vector.multi_reduction <maximumf>, %22, %cst_13 [0] : vector<64x64xf32> to vector<64xf32>
    %24 = vector.shape_cast %23 : vector<64xf32> to vector<1x64xf32>
    %25 = vector.broadcast %24 : vector<1x64xf32> to vector<64x64xf32>
    %26 = arith.cmpf oeq, %22, %25 : vector<64x64xf32>
    %c64_i32_14 = arith.constant 64 : i32
    %27 = vector.broadcast %c64_i32_14 : i32 to vector<64x64xi32>
    %28 = arith.select %26, %7, %27 : vector<64x64xi1>, vector<64x64xi32>
    %cst_15 = arith.constant dense<2147483647> : vector<64xi32>
    %29 = vector.multi_reduction <minsi>, %28, %cst_15 [0] : vector<64x64xi32> to vector<64xi32>
    %30 = vector.shape_cast %29 : vector<64xi32> to vector<1x64xi32>
    %31 = vector.broadcast %30 : vector<1x64xi32> to vector<64x64xi32>
    %32 = arith.cmpi eq, %7, %31 : vector<64x64xi32>
    %cst_16 = arith.constant 1.000000e+00 : f32
    %33 = vector.broadcast %cst_16 : f32 to vector<64x64xf32>
    %34 = arith.select %32, %33, %20 : vector<64x64xi1>, vector<64x64xf32>
    %35 = vector.broadcast %cst_9 : f32 to vector<64x64xf32>
    %36 = arith.select %32, %35, %22 : vector<64x64xi1>, vector<64x64xf32>
    %c2_i32 = arith.constant 2 : i32
    %cst_17 = arith.constant dense<0xFF800000> : vector<64xf32>
    %37 = vector.multi_reduction <maximumf>, %36, %cst_17 [0] : vector<64x64xf32> to vector<64xf32>
    %38 = vector.shape_cast %37 : vector<64xf32> to vector<1x64xf32>
    %39 = vector.broadcast %38 : vector<1x64xf32> to vector<64x64xf32>
    %40 = arith.cmpf oeq, %36, %39 : vector<64x64xf32>
    %c64_i32_18 = arith.constant 64 : i32
    %41 = vector.broadcast %c64_i32_18 : i32 to vector<64x64xi32>
    %42 = arith.select %40, %7, %41 : vector<64x64xi1>, vector<64x64xi32>
    %cst_19 = arith.constant dense<2147483647> : vector<64xi32>
    %43 = vector.multi_reduction <minsi>, %42, %cst_19 [0] : vector<64x64xi32> to vector<64xi32>
    %44 = vector.shape_cast %43 : vector<64xi32> to vector<1x64xi32>
    %45 = vector.broadcast %44 : vector<1x64xi32> to vector<64x64xi32>
    %46 = arith.cmpi eq, %7, %45 : vector<64x64xi32>
    %cst_20 = arith.constant 1.000000e+00 : f32
    %47 = vector.broadcast %cst_20 : f32 to vector<64x64xf32>
    %48 = arith.select %46, %47, %34 : vector<64x64xi1>, vector<64x64xf32>
    %49 = vector.broadcast %cst_9 : f32 to vector<64x64xf32>
    %50 = arith.select %46, %49, %36 : vector<64x64xi1>, vector<64x64xf32>
    %c3_i32 = arith.constant 3 : i32
    %cst_21 = arith.constant dense<0xFF800000> : vector<64xf32>
    %51 = vector.multi_reduction <maximumf>, %50, %cst_21 [0] : vector<64x64xf32> to vector<64xf32>
    %52 = vector.shape_cast %51 : vector<64xf32> to vector<1x64xf32>
    %53 = vector.broadcast %52 : vector<1x64xf32> to vector<64x64xf32>
    %54 = arith.cmpf oeq, %50, %53 : vector<64x64xf32>
    %c64_i32_22 = arith.constant 64 : i32
    %55 = vector.broadcast %c64_i32_22 : i32 to vector<64x64xi32>
    %56 = arith.select %54, %7, %55 : vector<64x64xi1>, vector<64x64xi32>
    %cst_23 = arith.constant dense<2147483647> : vector<64xi32>
    %57 = vector.multi_reduction <minsi>, %56, %cst_23 [0] : vector<64x64xi32> to vector<64xi32>
    %58 = vector.shape_cast %57 : vector<64xi32> to vector<1x64xi32>
    %59 = vector.broadcast %58 : vector<1x64xi32> to vector<64x64xi32>
    %60 = arith.cmpi eq, %7, %59 : vector<64x64xi32>
    %cst_24 = arith.constant 1.000000e+00 : f32
    %61 = vector.broadcast %cst_24 : f32 to vector<64x64xf32>
    %62 = arith.select %60, %61, %48 : vector<64x64xi1>, vector<64x64xf32>
    %63 = vector.broadcast %cst_9 : f32 to vector<64x64xf32>
    %64 = arith.select %60, %63, %50 : vector<64x64xi1>, vector<64x64xf32>
    %65 = arith.mulf %62, %6 : vector<64x64xf32>
    %cst_25 = arith.constant dense<0.000000e+00> : vector<5x64xf32>
    %66 = tpu.matmul %5, %65, %cst_25 {dimension_numbers = #tpu.dot_dimension_numbers<[1], [0], [0], [1], [0, 0, 1, 1], [], []>} : vector<5x64xf32>, vector<64x64xf32>, vector<5x64xf32> -> vector<5x64xf32>
    %c0_26 = arith.constant 0 : index
    %c0_27 = arith.constant 0 : index
    %c0_28 = arith.constant 0 : index
    %67 = vector.load %arg5[%c0_26, %c0_27, %c0_28] : memref<1x5x64xf32, #tpu.memory_space<vmem>>, vector<1x5x64xf32>
    %68 = vector.shape_cast %67 : vector<1x5x64xf32> to vector<5x64xf32>
    %69 = vector.shape_cast %66 : vector<5x64xf32> to vector<1x5x64xf32>
    tpu.vector_store %arg5[%c0_26, %c0_27, %c0_28], %69 {strides = array<i32>} : memref<1x5x64xf32, #tpu.memory_space<vmem>>, vector<1x5x64xf32>,
    return
  }
  func.func @transform_0(%arg0: i32, %arg1: i32) -> (i32, i32, i32) {
    %c0_i32 = arith.constant 0 : i32
    %c0_i32_0 = arith.constant 0 : i32
    %c0_i32_1 = arith.constant 0 : i32
    return %arg0, %c0_i32, %c0_i32_0 : i32, i32, i32
  }
  func.func @transform_1(%arg0: i32, %arg1: i32) -> (i32, i32, i32) {
    %c0_i32 = arith.constant 0 : i32
    %c0_i32_0 = arith.constant 0 : i32
    return %arg0, %c0_i32, %arg1 : i32, i32, i32
  }
  func.func @transform_2(%arg0: i32, %arg1: i32) -> (i32, i32, i32) {
    %c0_i32 = arith.constant 0 : i32
    %c0_i32_0 = arith.constant 0 : i32
    %c0_i32_1 = arith.constant 0 : i32
    return %arg0, %c0_i32, %c0_i32_0 : i32, i32, i32
  }
  func.func @transform_3(%arg0: i32, %arg1: i32) -> (i32, i32, i32) {
    %c0_i32 = arith.constant 0 : i32
    %c0_i32_0 = arith.constant 0 : i32
    return %arg0, %c0_i32, %arg1 : i32, i32, i32
  }
}

</mosaic_0001>

<llo_original>
// kernel: spnet_forward.5
$region0: #{spnet_forward.5}
  #allocation0 [shape = 'u32[]', space=smem, size = 0x4, offset = 0x4, fixed_abs, tag = 'smem constant byte address 0x4 - core index']
  #allocation1 [shape = 'u32[144,128]{1,0:T(1,128)}', space=vmem, size = 0x12000, scoped, tag = 'internal scratch']
  #allocation2 [shape = 'f32[256,128]{1,0:T(8,128)}', space=vmem, size = 0x20000, scoped, tag = 'scratch operand']
  %s0 = inlined_call_operand.vmem [shape: bf16[256,128], index: 0, kind: input, shape index: {}]
  %s1 = inlined_call_operand.vmem [shape: bf16[128,128], index: 1, kind: input, shape index: {}]
  %s2 = inlined_call_operand.vmem [shape: f32[1,128], index: 2, kind: input, shape index: {}]
  %s3 = inlined_call_operand.vmem [shape: f32[256,128], index: 3, kind: output, shape index: {}]
  %s4 = sld [smem:[#allocation0]]
  $region30: #{spnet_forward.5} parent=0
    _
  %s6 = ssub.s32 1, %s4
  %s7 = scalar_select 0, %s6, %s4
  // Predicated region
  $region2: #{spnet_forward.5} parent=0 // pred_check
    _
  $region3: #{spnet_forward.5} parent=0 // pred_check_branch
    %9 = sbr.rel (0) target = $region5
  $region4: #{spnet_forward.5} parent=0 // pred_region
    _
  $region5: #{spnet_forward.5} parent=0 // pred_fallthru
    _
  // Predicated region
  $region6: #{spnet_forward.5} parent=0 // pred_check
    _
  $region7: #{spnet_forward.5} parent=0 // pred_check_branch
    %11 = sbr.rel (0) target = $region9
  $region8: #{spnet_forward.5} parent=0 // pred_region
    _
  $region9: #{spnet_forward.5} parent=0 // pred_fallthru
    _
  // Predicated region
  $region10: #{spnet_forward.5} parent=0 // pred_check
    _
  $region11: #{spnet_forward.5} parent=0 // pred_check_branch
    %13 = sbr.rel (0) target = $region13
  $region12: #{spnet_forward.5} parent=0 // pred_region
    _
  $region13: #{spnet_forward.5} parent=0 // pred_fallthru
    _
  %p15 = scmp.eq.s32.totalorder 0, 0
  // Predicated region
  $region14: #{spnet_forward.5} parent=0 // pred_check
    %p16 = pneg %p15
  $region15: #{spnet_forward.5} parent=0 // pred_check_branch
    %18 = sbr.rel (%p16) target = $region17
  $region16: #{spnet_forward.5} parent=0 // pred_region
    %19 = vst [vmem:[#allocation2] sm:$0xff] 0.0
    %20 = vst [vmem:[#allocation2 + $0x8] sm:$0xff] 0.0
    %21 = vst [vmem:[#allocation2 + $0x10] sm:$0xff] 0.0
    %22 = vst [vmem:[#allocation2 + $0x18] sm:$0xff] 0.0
    %23 = vst [vmem:[#allocation2 + $0x20] sm:$0xff] 0.0
    %24 = vst [vmem:[#allocation2 + $0x28] sm:$0xff] 0.0
    %25 = vst [vmem:[#allocation2 + $0x30] sm:$0xff] 0.0
    %26 = vst [vmem:[#allocation2 + $0x38] sm:$0xff] 0.0
    %27 = vst [vmem:[#allocation2 + $0x40] sm:$0xff] 0.0
    %28 = vst [vmem:[#allocation2 + $0x48] sm:$0xff] 0.0
    %29 = vst [vmem:[#allocation2 + $0x50] sm:$0xff] 0.0
    %30 = vst [vmem:[#allocation2 + $0x58] sm:$0xff] 0.0
    %31 = vst [vmem:[#allocation2 + $0x60] sm:$0xff] 0.0
    %32 = vst [vmem:[#allocation2 + $0x68] sm:$0xff] 0.0
    %33 = vst [vmem:[#allocation2 + $0x70] sm:$0xff] 0.0
    %34 = vst [vmem:[#allocation2 + $0x78] sm:$0xff] 0.0
    %35 = vst [vmem:[#allocation2 + $0x80] sm:$0xff] 0.0
    %36 = vst [vmem:[#allocation2 + $0x88] sm:$0xff] 0.0
    %37 = vst [vmem:[#allocation2 + $0x90] sm:$0xff] 0.0
    %38 = vst [vmem:[#allocation2 + $0x98] sm:$0xff] 0.0
    %39 = vst [vmem:[#allocation2 + $0xa0] sm:$0xff] 0.0
    %40 = vst [vmem:[#allocation2 + $0xa8] sm:$0xff] 0.0
    %41 = vst [vmem:[#allocation2 + $0xb0] sm:$0xff] 0.0
    %42 = vst [vmem:[#allocation2 + $0xb8] sm:$0xff] 0.0
    %43 = vst [vmem:[#allocation2 + $0xc0] sm:$0xff] 0.0
    %44 = vst [vmem:[#allocation2 + $0xc8] sm:$0xff] 0.0
    %45 = vst [vmem:[#allocation2 + $0xd0] sm:$0xff] 0.0
    %46 = vst [vmem:[#allocation2 + $0xd8] sm:$0xff] 0.0
    %47 = vst [vmem:[#allocation2 + $0xe0] sm:$0xff] 0.0
    %48 = vst [vmem:[#allocation2 + $0xe8] sm:$0xff] 0.0
    %49 = vst [vmem:[#allocation2 + $0xf0] sm:$0xff] 0.0
    %50 = vst [vmem:[#allocation2 + $0xf8] sm:$0xff] 0.0
  $region17: #{spnet_forward.5} parent=0 // pred_fallthru
    _
  %v51 = vld [vmem:[#allocation2] sm:$0xff]
  %v52 = vld [vmem:[#allocation2 + $0x8] sm:$0xff]
  %v53 = vld [vmem:[#allocation2 + $0x10] sm:$0xff]
  %v54 = vld [vmem:[#allocation2 + $0x18] sm:$0xff]
  %v55 = vld [vmem:[#allocation2 + $0x20] sm:$0xff]
  %v56 = vld [vmem:[#allocation2 + $0x28] sm:$0xff]
  %v57 = vld [vmem:[#allocation2 + $0x30] sm:$0xff]
  %v58 = vld [vmem:[#allocation2 + $0x38] sm:$0xff]
  %v59 = vld [vmem:[#allocation2 + $0x40] sm:$0xff]
  %v60 = vld [vmem:[#allocation2 + $0x48] sm:$0xff]
  %v61 = vld [vmem:[#allocation2 + $0x50] sm:$0xff]
  %v62 = vld [vmem:[#allocation2 + $0x58] sm:$0xff]
  %v63 = vld [vmem:[#allocation2 + $0x60] sm:$0xff]
  %v64 = vld [vmem:[#allocation2 + $0x68] sm:$0xff]
  %v65 = vld [vmem:[#allocation2 + $0x70] sm:$0xff]
  %v66 = vld [vmem:[#allocation2 + $0x78] sm:$0xff]
  %v67 = vld [vmem:[#allocation2 + $0x80] sm:$0xff]
  %v68 = vld [vmem:[#allocation2 + $0x88] sm:$0xff]
  %v69 = vld [vmem:[#allocation2 + $0x90] sm:$0xff]
  %v70 = vld [vmem:[#allocation2 + $0x98] sm:$0xff]
  %v71 = vld [vmem:[#allocation2 + $0xa0] sm:$0xff]
  %v72 = vld [vmem:[#allocation2 + $0xa8] sm:$0xff]
  %v73 = vld [vmem:[#allocation2 + $0xb0] sm:$0xff]
  %v74 = vld [vmem:[#allocation2 + $0xb8] sm:$0xff]
  %v75 = vld [vmem:[#allocation2 + $0xc0] sm:$0xff]
  %v76 = vld [vmem:[#allocation2 + $0xc8] sm:$0xff]
  %v77 = vld [vmem:[#allocation2 + $0xd0] sm:$0xff]
  %v78 = vld [vmem:[#allocation2 + $0xd8] sm:$0xff]
  %v79 = vld [vmem:[#allocation2 + $0xe0] sm:$0xff]
  %v80 = vld [vmem:[#allocation2 + $0xe8] sm:$0xff]
  %v81 = vld [vmem:[#allocation2 + $0xf0] sm:$0xff]
  %v82 = vld [vmem:[#allocation2 + $0xf8] sm:$0xff]
  %v83 = vld [vmem:[%s0] sm:$0xf]
  %v84 = vld [vmem:[%s0 + $0x4] sm:$0xf]
  %v85 = vld [vmem:[%s0 + $0x8] sm:$0xf]
  %v86 = vld [vmem:[%s0 + $0xc] sm:$0xf]
  %v87 = vld [vmem:[%s0 + $0x10] sm:$0xf]
  %v88 = vld [vmem:[%s0 + $0x14] sm:$0xf]
  %v89 = vld [vmem:[%s0 + $0x18] sm:$0xf]
  %v90 = vld [vmem:[%s0 + $0x1c] sm:$0xf]
  %v91 = vld [vmem:[%s0 + $0x20] sm:$0xf]
  %v92 = vld [vmem:[%s0 + $0x24] sm:$0xf]
  %v93 = vld [vmem:[%s0 + $0x28] sm:$0xf]
  %v94 = vld [vmem:[%s0 + $0x2c] sm:$0xf]
  %v95 = vld [vmem:[%s0 + $0x30] sm:$0xf]
  %v96 = vld [vmem:[%s0 + $0x34] sm:$0xf]
  %v97 = vld [vmem:[%s0 + $0x38] sm:$0xf]
  %v98 = vld [vmem:[%s0 + $0x3c] sm:$0xf]
  %v99 = vld [vmem:[%s0 + $0x40] sm:$0xf]
  %v100 = vld [vmem:[%s0 + $0x44] sm:$0xf]
  %v101 = vld [vmem:[%s0 + $0x48] sm:$0xf]
  %v102 = vld [vmem:[%s0 + $0x4c] sm:$0xf]
  %v103 = vld [vmem:[%s0 + $0x50] sm:$0xf]
  %v104 = vld [vmem:[%s0 + $0x54] sm:$0xf]
  %v105 = vld [vmem:[%s0 + $0x58] sm:$0xf]
  %v106 = vld [vmem:[%s0 + $0x5c] sm:$0xf]
  %v107 = vld [vmem:[%s0 + $0x60] sm:$0xf]
  %v108 = vld [vmem:[%s0 + $0x64] sm:$0xf]
  %v109 = vld [vmem:[%s0 + $0x68] sm:$0xf]
  %v110 = vld [vmem:[%s0 + $0x6c] sm:$0xf]
  %v111 = vld [vmem:[%s0 + $0x70] sm:$0xf]
  %v112 = vld [vmem:[%s0 + $0x74] sm:$0xf]
  %v113 = vld [vmem:[%s0 + $0x78] sm:$0xf]
  %v114 = vld [vmem:[%s0 + $0x7c] sm:$0xf]
  %v115 = vld [vmem:[%s1] sm:$0xf]
  %v116 = vld [vmem:[%s1 + $0x4] sm:$0xf]
  %v117 = vld [vmem:[%s1 + $0x8] sm:$0xf]
  %v118 = vld [vmem:[%s1 + $0xc] sm:$0xf]
  %v119 = vld [vmem:[%s1 + $0x10] sm:$0xf]
  %v120 = vld [vmem:[%s1 + $0x14] sm:$0xf]
  %v121 = vld [vmem:[%s1 + $0x18] sm:$0xf]
  %v122 = vld [vmem:[%s1 + $0x1c] sm:$0xf]
  %v123 = vld [vmem:[%s1 + $0x20] sm:$0xf]
  %v124 = vld [vmem:[%s1 + $0x24] sm:$0xf]
  %v125 = vld [vmem:[%s1 + $0x28] sm:$0xf]
  %v126 = vld [vmem:[%s1 + $0x2c] sm:$0xf]
  %v127 = vld [vmem:[%s1 + $0x30] sm:$0xf]
  %v128 = vld [vmem:[%s1 + $0x34] sm:$0xf]
  %v129 = vld [vmem:[%s1 + $0x38] sm:$0xf]
  %v130 = vld [vmem:[%s1 + $0x3c] sm:$0xf]
  %v163 = vunpack.c.l.b16 %v83
  %v164 = vunpack.c.l.b16 %v84
  %v165 = vunpack.c.l.b16 %v85
  %v166 = vunpack.c.l.b16 %v86
  %v167 = vunpack.c.l.b16 %v87
  %v168 = vunpack.c.l.b16 %v88
  %v169 = vunpack.c.l.b16 %v89
  %v170 = vunpack.c.l.b16 %v90
  %v171 = vunpack.c.l.b16 %v91
  %v172 = vunpack.c.l.b16 %v92
  %v173 = vunpack.c.l.b16 %v93
  %v174 = vunpack.c.l.b16 %v94
  %v175 = vunpack.c.l.b16 %v95
  %v176 = vunpack.c.l.b16 %v96
  %v177 = vunpack.c.l.b16 %v97
  %v178 = vunpack.c.l.b16 %v98
  %v179 = vunpack.c.l.b16 %v99
  %v180 = vunpack.c.l.b16 %v100
  %v181 = vunpack.c.l.b16 %v101
  %v182 = vunpack.c.l.b16 %v102
  %v183 = vunpack.c.l.b16 %v103
  %v184 = vunpack.c.l.b16 %v104
  %v185 = vunpack.c.l.b16 %v105
  %v186 = vunpack.c.l.b16 %v106
  %v187 = vunpack.c.l.b16 %v107
  %v188 = vunpack.c.l.b16 %v108
  %v189 = vunpack.c.l.b16 %v109
  %v190 = vunpack.c.l.b16 %v110
  %v191 = vunpack.c.l.b16 %v111
  %v192 = vunpack.c.l.b16 %v112
  %v193 = vunpack.c.l.b16 %v113
  %v194 = vunpack.c.l.b16 %v114
  %v195 = vpack.c.b16 %v164, %v163
  %v196 = vpack.c.b16 %v166, %v165
  %v197 = vpack.c.b16 %v168, %v167
  %v198 = vpack.c.b16 %v170, %v169
  %v199 = vpack.c.b16 %v172, %v171
  %v200 = vpack.c.b16 %v174, %v173
  %v201 = vpack.c.b16 %v176, %v175
  %v202 = vpack.c.b16 %v178, %v177
  %v203 = vpack.c.b16 %v180, %v179
  %v204 = vpack.c.b16 %v182, %v181
  %v205 = vpack.c.b16 %v184, %v183
  %v206 = vpack.c.b16 %v186, %v185
  %v207 = vpack.c.b16 %v188, %v187
  %v208 = vpack.c.b16 %v190, %v189
  %v209 = vpack.c.b16 %v192, %v191
  %v210 = vpack.c.b16 %v194, %v193
  %v243 = vunpack.c.l.b16 %v115
  %v244 = vunpack.c.l.b16 %v116
  %v245 = vunpack.c.l.b16 %v117
  %v246 = vunpack.c.l.b16 %v118
  %v247 = vunpack.c.l.b16 %v119
  %v248 = vunpack.c.l.b16 %v120
  %v249 = vunpack.c.l.b16 %v121
  %v250 = vunpack.c.l.b16 %v122
  %v251 = vunpack.c.l.b16 %v123
  %v252 = vunpack.c.l.b16 %v124
  %v253 = vunpack.c.l.b16 %v125
  %v254 = vunpack.c.l.b16 %v126
  %v255 = vunpack.c.l.b16 %v127
  %v256 = vunpack.c.l.b16 %v128
  %v257 = vunpack.c.l.b16 %v129
  %v258 = vunpack.c.l.b16 %v130
  %v259 = vpack.c.b16 %v244, %v243
  %v260 = vpack.c.b16 %v246, %v245
  %v261 = vpack.c.b16 %v248, %v247
  %v262 = vpack.c.b16 %v250, %v249
  %v263 = vpack.c.b16 %v252, %v251
  %v264 = vpack.c.b16 %v254, %v253
  %v265 = vpack.c.b16 %v256, %v255
  %v266 = vpack.c.b16 %v258, %v257
  %275 = vmatprep.subr.bf16.mxu0 0
  %276 = vmatpush1.bf16.msra.mxu0 %v259
  %277 = vmatprep.subr.bf16.mxu0 0
  %278 = vmatpush1.bf16.msra.mxu0 %v260
  %279 = vmatprep.subr.bf16.mxu0 0
  %280 = vmatpush1.bf16.msra.mxu0 %v261
  %281 = vmatprep.subr.bf16.mxu0 0
  %282 = vmatpush1.bf16.msra.mxu0 %v262
  %283 = vmatprep.subr.bf16.mxu0 0
  %284 = vmatpush1.bf16.msra.mxu0 %v263
  %285 = vmatprep.subr.bf16.mxu0 0
  %286 = vmatpush1.bf16.msra.mxu0 %v264
  %287 = vmatprep.subr.bf16.mxu0 0
  %288 = vmatpush1.bf16.msra.mxu0 %v265
  %289 = vmatprep.subr.bf16.mxu0 0
  %290 = vmatpush1.bf16.msra.mxu0 %v266
  %291 = vmatprep.subr.bf16.mxu0 0
  %292 = vmatpush1.bf16.msra.mxu0 0
  %293 = vmatprep.subr.bf16.mxu0 0
  %294 = vmatpush1.bf16.msra.mxu0 0
  %295 = vmatprep.subr.bf16.mxu0 0
  %296 = vmatpush1.bf16.msra.mxu0 0
  %297 = vmatprep.subr.bf16.mxu0 0
  %298 = vmatpush1.bf16.msra.mxu0 0
  %299 = vmatprep.subr.bf16.mxu0 0
  %300 = vmatpush1.bf16.msra.mxu0 0
  %301 = vmatprep.subr.bf16.mxu0 0
  %302 = vmatpush1.bf16.msra.mxu0 0
  %303 = vmatprep.subr.bf16.mxu0 0
  %304 = vmatpush1.bf16.msra.mxu0 0
  %305 = vmatprep.subr.bf16.mxu0 0
  %306 = vmatpush1.bf16.msra.mxu0 0
  %307 = vmatprep.mubr.bf16.mxu0 0
  %308 = vmatmul.mubr.bf16.gmra.mrb[0].mxu0 %v195
  %v309 = vpop.f32.mrb[0].mxu0
  %v310 = vadd.f32 0.0, %v309
  %v311 = vpop.f32.mrb[0].mxu0
  %v312 = vpop.f32.mrb[0].mxu0
  %v313 = vadd.f32 0.0, %v312
  %v314 = vpop.f32.mrb[0].mxu0
  %315 = vmatprep.mubr.bf16.mxu0 0
  %316 = vmatmul.mubr.bf16.gmra.mrb[0].mxu0 %v196
  %v317 = vpop.f32.mrb[0].mxu0
  %v318 = vadd.f32 0.0, %v317
  %v319 = vpop.f32.mrb[0].mxu0
  %v320 = vpop.f32.mrb[0].mxu0
  %v321 = vadd.f32 0.0, %v320
  %v322 = vpop.f32.mrb[0].mxu0
  %323 = vmatprep.mubr.bf16.mxu0 0
  %324 = vmatmul.mubr.bf16.gmra.mrb[0].mxu0 %v197
  %v325 = vpop.f32.mrb[0].mxu0
  %v326 = vadd.f32 0.0, %v325
  %v327 = vpop.f32.mrb[0].mxu0
  %v328 = vpop.f32.mrb[0].mxu0
  %v329 = vadd.f32 0.0, %v328
  %v330 = vpop.f32.mrb[0].mxu0
  %331 = vmatprep.mubr.bf16.mxu0 0
  %332 = vmatmul.mubr.bf16.gmra.mrb[0].mxu0 %v198
  %v333 = vpop.f32.mrb[0].mxu0
  %v334 = vadd.f32 0.0, %v333
  %v335 = vpop.f32.mrb[0].mxu0
  %v336 = vpop.f32.mrb[0].mxu0
  %v337 = vadd.f32 0.0, %v336
  %v338 = vpop.f32.mrb[0].mxu0
  %339 = vmatprep.mubr.bf16.mxu0 0
  %340 = vmatmul.mubr.bf16.gmra.mrb[0].mxu0 %v199
  %v341 = vpop.f32.mrb[0].mxu0
  %v342 = vadd.f32 0.0, %v341
  %v343 = vpop.f32.mrb[0].mxu0
  %v344 = vpop.f32.mrb[0].mxu0
  %v345 = vadd.f32 0.0, %v344
  %v346 = vpop.f32.mrb[0].mxu0
  %347 = vmatprep.mubr.bf16.mxu0 0
  %348 = vmatmul.mubr.bf16.gmra.mrb[0].mxu0 %v200
  %v349 = vpop.f32.mrb[0].mxu0
  %v350 = vadd.f32 0.0, %v349
  %v351 = vpop.f32.mrb[0].mxu0
  %v352 = vpop.f32.mrb[0].mxu0
  %v353 = vadd.f32 0.0, %v352
  %v354 = vpop.f32.mrb[0].mxu0
  %355 = vmatprep.mubr.bf16.mxu0 0
  %356 = vmatmul.mubr.bf16.gmra.mrb[0].mxu0 %v201
  %v357 = vpop.f32.mrb[0].mxu0
  %v358 = vadd.f32 0.0, %v357
  %v359 = vpop.f32.mrb[0].mxu0
  %v360 = vpop.f32.mrb[0].mxu0
  %v361 = vadd.f32 0.0, %v360
  %v362 = vpop.f32.mrb[0].mxu0
  %363 = vmatprep.mubr.bf16.mxu0 0
  %364 = vmatmul.mubr.bf16.gmra.mrb[0].mxu0 %v202
  %v365 = vpop.f32.mrb[0].mxu0
  %v366 = vadd.f32 0.0, %v365
  %v367 = vpop.f32.mrb[0].mxu0
  %v368 = vpop.f32.mrb[0].mxu0
  %v369 = vadd.f32 0.0, %v368
  %v370 = vpop.f32.mrb[0].mxu0
  %371 = vmatprep.mubr.bf16.mxu0 0
  %372 = vmatmul.mubr.bf16.gmra.mrb[0].mxu0 %v203
  %v373 = vpop.f32.mrb[0].mxu0
  %v374 = vadd.f32 0.0, %v373
  %v375 = vpop.f32.mrb[0].mxu0
  %v376 = vpop.f32.mrb[0].mxu0
  %v377 = vadd.f32 0.0, %v376
  %v378 = vpop.f32.mrb[0].mxu0
  %379 = vmatprep.mubr.bf16.mxu0 0
  %380 = vmatmul.mubr.bf16.gmra.mrb[0].mxu0 %v204
  %v381 = vpop.f32.mrb[0].mxu0
  %v382 = vadd.f32 0.0, %v381
  %v383 = vpop.f32.mrb[0].mxu0
  %v384 = vpop.f32.mrb[0].mxu0
  %v385 = vadd.f32 0.0, %v384
  %v386 = vpop.f32.mrb[0].mxu0
  %387 = vmatprep.mubr.bf16.mxu0 0
  %388 = vmatmul.mubr.bf16.gmra.mrb[0].mxu0 %v205
  %v389 = vpop.f32.mrb[0].mxu0
  %v390 = vadd.f32 0.0, %v389
  %v391 = vpop.f32.mrb[0].mxu0
  %v392 = vpop.f32.mrb[0].mxu0
  %v393 = vadd.f32 0.0, %v392
  %v394 = vpop.f32.mrb[0].mxu0
  %395 = vmatprep.mubr.bf16.mxu0 0
  %396 = vmatmul.mubr.bf16.gmra.mrb[0].mxu0 %v206
  %v397 = vpop.f32.mrb[0].mxu0
  %v398 = vadd.f32 0.0, %v397
  %v399 = vpop.f32.mrb[0].mxu0
  %v400 = vpop.f32.mrb[0].mxu0
  %v401 = vadd.f32 0.0, %v400
  %v402 = vpop.f32.mrb[0].mxu0
  %403 = vmatprep.mubr.bf16.mxu0 0
  %404 = vmatmul.mubr.bf16.gmra.mrb[0].mxu0 %v207
  %v405 = vpop.f32.mrb[0].mxu0
  %v406 = vadd.f32 0.0, %v405
  %v407 = vpop.f32.mrb[0].mxu0
  %v408 = vpop.f32.mrb[0].mxu0
  %v409 = vadd.f32 0.0, %v408
  %v410 = vpop.f32.mrb[0].mxu0
  %411 = vmatprep.mubr.bf16.mxu0 0
  %412 = vmatmul.mubr.bf16.gmra.mrb[0].mxu0 %v208
  %v413 = vpop.f32.mrb[0].mxu0
  %v414 = vadd.f32 0.0, %v413
  %v415 = vpop.f32.mrb[0].mxu0
  %v416 = vpop.f32.mrb[0].mxu0
  %v417 = vadd.f32 0.0, %v416
  %v418 = vpop.f32.mrb[0].mxu0
  %419 = vmatprep.mubr.bf16.mxu0 0
  %420 = vmatmul.mubr.bf16.gmra.mrb[0].mxu0 %v209
  %v421 = vpop.f32.mrb[0].mxu0
  %v422 = vadd.f32 0.0, %v421
  %v423 = vpop.f32.mrb[0].mxu0
  %v424 = vpop.f32.mrb[0].mxu0
  %v425 = vadd.f32 0.0, %v424
  %v426 = vpop.f32.mrb[0].mxu0
  %427 = vmatprep.mubr.bf16.mxu0 0
  %428 = vmatmul.mubr.bf16.gmra.mrb[0].mxu0 %v210
  %v429 = vpop.f32.mrb[0].mxu0
  %v430 = vadd.f32 0.0, %v429
  %v431 = vpop.f32.mrb[0].mxu0
  %v432 = vpop.f32.mrb[0].mxu0
  %v433 = vadd.f32 0.0, %v432
  %v434 = vpop.f32.mrb[0].mxu0
  %435 = vdwg.mxu0
  %v436 = vadd.f32 %v51, %v310
  %v437 = vadd.f32 %v52, %v313
  %v438 = vadd.f32 %v53, %v318
  %v439 = vadd.f32 %v54, %v321
  %v440 = vadd.f32 %v55, %v326
  %v441 = vadd.f32 %v56, %v329
  %v442 = vadd.f32 %v57, %v334
  %v443 = vadd.f32 %v58, %v337
  %v444 = vadd.f32 %v59, %v342
  %v445 = vadd.f32 %v60, %v345
  %v446 = vadd.f32 %v61, %v350
  %v447 = vadd.f32 %v62, %v353
  %v448 = vadd.f32 %v63, %v358
  %v449 = vadd.f32 %v64, %v361
  %v450 = vadd.f32 %v65, %v366
  %v451 = vadd.f32 %v66, %v369
  %v452 = vadd.f32 %v67, %v374
  %v453 = vadd.f32 %v68, %v377
  %v454 = vadd.f32 %v69, %v382
  %v455 = vadd.f32 %v70, %v385
  %v456 = vadd.f32 %v71, %v390
  %v457 = vadd.f32 %v72, %v393
  %v458 = vadd.f32 %v73, %v398
  %v459 = vadd.f32 %v74, %v401
  %v460 = vadd.f32 %v75, %v406
  %v461 = vadd.f32 %v76, %v409
  %v462 = vadd.f32 %v77, %v414
  %v463 = vadd.f32 %v78, %v417
  %v464 = vadd.f32 %v79, %v422
  %v465 = vadd.f32 %v80, %v425
  %v466 = vadd.f32 %v81, %v430
  %v467 = vadd.f32 %v82, %v433
  %468 = vst [vmem:[#allocation2] sm:$0xff] %v436
  %469 = vst [vmem:[#allocation2 + $0x8] sm:$0xff] %v437
  %470 = vst [vmem:[#allocation2 + $0x10] sm:$0xff] %v438
  %471 = vst [vmem:[#allocation2 + $0x18] sm:$0xff] %v439
  %472 = vst [vmem:[#allocation2 + $0x20] sm:$0xff] %v440
  %473 = vst [vmem:[#allocation2 + $0x28] sm:$0xff] %v441
  %474 = vst [vmem:[#allocation2 + $0x30] sm:$0xff] %v442
  %475 = vst [vmem:[#allocation2 + $0x38] sm:$0xff] %v443
  %476 = vst [vmem:[#allocation2 + $0x40] sm:$0xff] %v444
  %477 = vst [vmem:[#allocation2 + $0x48] sm:$0xff] %v445
  %478 = vst [vmem:[#allocation2 + $0x50] sm:$0xff] %v446
  %479 = vst [vmem:[#allocation2 + $0x58] sm:$0xff] %v447
  %480 = vst [vmem:[#allocation2 + $0x60] sm:$0xff] %v448
  %481 = vst [vmem:[#allocation2 + $0x68] sm:$0xff] %v449
  %482 = vst [vmem:[#allocation2 + $0x70] sm:$0xff] %v450
  %483 = vst [vmem:[#allocation2 + $0x78] sm:$0xff] %v451
  %484 = vst [vmem:[#allocation2 + $0x80] sm:$0xff] %v452
  %485 = vst [vmem:[#allocation2 + $0x88] sm:$0xff] %v453
  %486 = vst [vmem:[#allocation2 + $0x90] sm:$0xff] %v454
  %487 = vst [vmem:[#allocation2 + $0x98] sm:$0xff] %v455
  %488 = vst [vmem:[#allocation2 + $0xa0] sm:$0xff] %v456
  %489 = vst [vmem:[#allocation2 + $0xa8] sm:$0xff] %v457
  %490 = vst [vmem:[#allocation2 + $0xb0] sm:$0xff] %v458
  %491 = vst [vmem:[#allocation2 + $0xb8] sm:$0xff] %v459
  %492 = vst [vmem:[#allocation2 + $0xc0] sm:$0xff] %v460
  %493 = vst [vmem:[#allocation2 + $0xc8] sm:$0xff] %v461
  %494 = vst [vmem:[#allocation2 + $0xd0] sm:$0xff] %v462
  %495 = vst [vmem:[#allocation2 + $0xd8] sm:$0xff] %v463
  %496 = vst [vmem:[#allocation2 + $0xe0] sm:$0xff] %v464
  %497 = vst [vmem:[#allocation2 + $0xe8] sm:$0xff] %v465
  %498 = vst [vmem:[#allocation2 + $0xf0] sm:$0xff] %v466
  %499 = vst [vmem:[#allocation2 + $0xf8] sm:$0xff] %v467
  // Predicated region
  $region18: #{spnet_forward.5} parent=0 // pred_check
    %p500 = pneg %p15
  $region19: #{spnet_forward.5} parent=0 // pred_check_branch
    %502 = sbr.rel (%p500) target = $region21
  $region20: #{spnet_forward.5} parent=0 // pred_region
    %v503 = vld [vmem:[#allocation2] sm:$0xff]
    %v504 = vld [vmem:[#allocation2 + $0x8] sm:$0xff]
    %v505 = vld [vmem:[#allocation2 + $0x10] sm:$0xff]
    %v506 = vld [vmem:[#allocation2 + $0x18] sm:$0xff]
    %v507 = vld [vmem:[#allocation2 + $0x20] sm:$0xff]
    %v508 = vld [vmem:[#allocation2 + $0x28] sm:$0xff]
    %v509 = vld [vmem:[#allocation2 + $0x30] sm:$0xff]
    %v510 = vld [vmem:[#allocation2 + $0x38] sm:$0xff]
    %v511 = vld [vmem:[#allocation2 + $0x40] sm:$0xff]
    %v512 = vld [vmem:[#allocation2 + $0x48] sm:$0xff]
    %v513 = vld [vmem:[#allocation2 + $0x50] sm:$0xff]
    %v514 = vld [vmem:[#allocation2 + $0x58] sm:$0xff]
    %v515 = vld [vmem:[#allocation2 + $0x60] sm:$0xff]
    %v516 = vld [vmem:[#allocation2 + $0x68] sm:$0xff]
    %v517 = vld [vmem:[#allocation2 + $0x70] sm:$0xff]
    %v518 = vld [vmem:[#allocation2 + $0x78] sm:$0xff]
    %v519 = vld [vmem:[#allocation2 + $0x80] sm:$0xff]
    %v520 = vld [vmem:[#allocation2 + $0x88] sm:$0xff]
    %v521 = vld [vmem:[#allocation2 + $0x90] sm:$0xff]
    %v522 = vld [vmem:[#allocation2 + $0x98] sm:$0xff]
    %v523 = vld [vmem:[#allocation2 + $0xa0] sm:$0xff]
    %v524 = vld [vmem:[#allocation2 + $0xa8] sm:$0xff]
    %v525 = vld [vmem:[#allocation2 + $0xb0] sm:$0xff]
    %v526 = vld [vmem:[#allocation2 + $0xb8] sm:$0xff]
    %v527 = vld [vmem:[#allocation2 + $0xc0] sm:$0xff]
    %v528 = vld [vmem:[#allocation2 + $0xc8] sm:$0xff]
    %v529 = vld [vmem:[#allocation2 + $0xd0] sm:$0xff]
    %v530 = vld [vmem:[#allocation2 + $0xd8] sm:$0xff]
    %v531 = vld [vmem:[#allocation2 + $0xe0] sm:$0xff]
    %v532 = vld [vmem:[#allocation2 + $0xe8] sm:$0xff]
    %v533 = vld [vmem:[#allocation2 + $0xf0] sm:$0xff]
    %v534 = vld [vmem:[#allocation2 + $0xf8] sm:$0xff]
    %v535 = vld [vmem:[%s2] sm:$0x1]
    %v537 = vlaneseq
    %v538 = vshrl.u32 %v537, 7
    %v539 = vsub.s32 0, %v538
    %v540 = vrot.slane %v535, %v539
    %v542 = vadd.f32 %v503, %v540
    %v543 = vadd.f32 %v504, %v540
    %v544 = vadd.f32 %v505, %v540
    %v545 = vadd.f32 %v506, %v540
    %v546 = vadd.f32 %v507, %v540
    %v547 = vadd.f32 %v508, %v540
    %v548 = vadd.f32 %v509, %v540
    %v549 = vadd.f32 %v510, %v540
    %v550 = vadd.f32 %v511, %v540
    %v551 = vadd.f32 %v512, %v540
    %v552 = vadd.f32 %v513, %v540
    %v553 = vadd.f32 %v514, %v540
    %v554 = vadd.f32 %v515, %v540
    %v555 = vadd.f32 %v516, %v540
    %v556 = vadd.f32 %v517, %v540
    %v557 = vadd.f32 %v518, %v540
    %v558 = vadd.f32 %v519, %v540
    %v559 = vadd.f32 %v520, %v540
    %v560 = vadd.f32 %v521, %v540
    %v561 = vadd.f32 %v522, %v540
    %v562 = vadd.f32 %v523, %v540
    %v563 = vadd.f32 %v524, %v540
    %v564 = vadd.f32 %v525, %v540
    %v565 = vadd.f32 %v526, %v540
    %v566 = vadd.f32 %v527, %v540
    %v567 = vadd.f32 %v528, %v540
    %v568 = vadd.f32 %v529, %v540
    %v569 = vadd.f32 %v530, %v540
    %v570 = vadd.f32 %v531, %v540
    %v571 = vadd.f32 %v532, %v540
    %v572 = vadd.f32 %v533, %v540
    %v573 = vadd.f32 %v534, %v540
    %v574 = vmax.f32 %v542, 0.0
    %v575 = vmax.f32 %v543, 0.0
    %v576 = vmax.f32 %v544, 0.0
    %v577 = vmax.f32 %v545, 0.0
    %v578 = vmax.f32 %v546, 0.0
    %v579 = vmax.f32 %v547, 0.0
    %v580 = vmax.f32 %v548, 0.0
    %v581 = vmax.f32 %v549, 0.0
    %v582 = vmax.f32 %v550, 0.0
    %v583 = vmax.f32 %v551, 0.0
    %v584 = vmax.f32 %v552, 0.0
    %v585 = vmax.f32 %v553, 0.0
    %v586 = vmax.f32 %v554, 0.0
    %v587 = vmax.f32 %v555, 0.0
    %v588 = vmax.f32 %v556, 0.0
    %v589 = vmax.f32 %v557, 0.0
    %v590 = vmax.f32 %v558, 0.0
    %v591 = vmax.f32 %v559, 0.0
    %v592 = vmax.f32 %v560, 0.0
    %v593 = vmax.f32 %v561, 0.0
    %v594 = vmax.f32 %v562, 0.0
    %v595 = vmax.f32 %v563, 0.0
    %v596 = vmax.f32 %v564, 0.0
    %v597 = vmax.f32 %v565, 0.0
    %v598 = vmax.f32 %v566, 0.0
    %v599 = vmax.f32 %v567, 0.0
    %v600 = vmax.f32 %v568, 0.0
    %v601 = vmax.f32 %v569, 0.0
    %v602 = vmax.f32 %v570, 0.0
    %v603 = vmax.f32 %v571, 0.0
    %v604 = vmax.f32 %v572, 0.0
    %v605 = vmax.f32 %v573, 0.0
    %606 = vst [vmem:[%s3] sm:$0xff] %v574
    %607 = vst [vmem:[%s3 + $0x8] sm:$0xff] %v575
    %608 = vst [vmem:[%s3 + $0x10] sm:$0xff] %v576
    %609 = vst [vmem:[%s3 + $0x18] sm:$0xff] %v577
    %610 = vst [vmem:[%s3 + $0x20] sm:$0xff] %v578
    %611 = vst [vmem:[%s3 + $0x28] sm:$0xff] %v579
    %612 = vst [vmem:[%s3 + $0x30] sm:$0xff] %v580
    %613 = vst [vmem:[%s3 + $0x38] sm:$0xff] %v581
    %614 = vst [vmem:[%s3 + $0x40] sm:$0xff] %v582
    %615 = vst [vmem:[%s3 + $0x48] sm:$0xff] %v583
    %616 = vst [vmem:[%s3 + $0x50] sm:$0xff] %v584
    %617 = vst [vmem:[%s3 + $0x58] sm:$0xff] %v585
    %618 = vst [vmem:[%s3 + $0x60] sm:$0xff] %v586
    %619 = vst [vmem:[%s3 + $0x68] sm:$0xff] %v587
    %620 = vst [vmem:[%s3 + $0x70] sm:$0xff] %v588
    %621 = vst [vmem:[%s3 + $0x78] sm:$0xff] %v589
    %622 = vst [vmem:[%s3 + $0x80] sm:$0xff] %v590
    %623 = vst [vmem:[%s3 + $0x88] sm:$0xff] %v591
    %624 = vst [vmem:[%s3 + $0x90] sm:$0xff] %v592
    %625 = vst [vmem:[%s3 + $0x98] sm:$0xff] %v593
    %626 = vst [vmem:[%s3 + $0xa0] sm:$0xff] %v594
    %627 = vst [vmem:[%s3 + $0xa8] sm:$0xff] %v595
    %628 = vst [vmem:[%s3 + $0xb0] sm:$0xff] %v596
    %629 = vst [vmem:[%s3 + $0xb8] sm:$0xff] %v597
    %630 = vst [vmem:[%s3 + $0xc0] sm:$0xff] %v598
    %631 = vst [vmem:[%s3 + $0xc8] sm:$0xff] %v599
    %632 = vst [vmem:[%s3 + $0xd0] sm:$0xff] %v600
    %633 = vst [vmem:[%s3 + $0xd8] sm:$0xff] %v601
    %634 = vst [vmem:[%s3 + $0xe0] sm:$0xff] %v602
    %635 = vst [vmem:[%s3 + $0xe8] sm:$0xff] %v603
    %636 = vst [vmem:[%s3 + $0xf0] sm:$0xff] %v604
    %637 = vst [vmem:[%s3 + $0xf8] sm:$0xff] %v605
  $region21: #{spnet_forward.5} parent=0 // pred_fallthru
    _
  // Predicated region
  $region22: #{spnet_forward.5} parent=0 // pred_check
    _
  $region23: #{spnet_forward.5} parent=0 // pred_check_branch
    %639 = sbr.rel (0) target = $region25
  $region24: #{spnet_forward.5} parent=0 // pred_region
    _
  $region25: #{spnet_forward.5} parent=0 // pred_fallthru
    _
  // Predicated region
  $region26: #{spnet_forward.5} parent=0 // pred_check
    _
  $region27: #{spnet_forward.5} parent=0 // pred_check_branch
    %641 = sbr.rel (0) target = $region29
  $region28: #{spnet_forward.5} parent=0 // pred_region
    _
  $region29: #{spnet_forward.5} parent=0 // pred_fallthru
    _

// kernel: spnet_forward.7
$region0: #{spnet_forward.7}
  #allocation0 [shape = 'u32[]', space=smem, size = 0x4, offset = 0x4, fixed_abs, tag = 'smem constant byte address 0x4 - core index']
  #allocation1 [shape = 'u32[144,128]{1,0:T(1,128)}', space=vmem, size = 0x12000, scoped, tag = 'internal scratch']
  #allocation2 [shape = 'f32[256,128]{1,0:T(8,128)}', space=vmem, size = 0x20000, scoped, tag = 'scratch operand']
  %s0 = inlined_call_operand.vmem [shape: bf16[256,128], index: 0, kind: input, shape index: {}]
  %s1 = inlined_call_operand.vmem [shape: bf16[128,128], index: 1, kind: input, shape index: {}]
  %s2 = inlined_call_operand.vmem [shape: f32[1,128], index: 2, kind: input, shape index: {}]
  %s3 = inlined_call_operand.vmem [shape: f32[256,128], index: 3, kind: output, shape index: {}]
  %s4 = sld [smem:[#allocation0]]
  $region30: #{spnet_forward.7} parent=0
    _
  %s6 = ssub.s32 1, %s4
  %s7 = scalar_select 0, %s6, %s4
  // Predicated region
  $region2: #{spnet_forward.7} parent=0 // pred_check
    _
  $region3: #{spnet_forward.7} parent=0 // pred_check_branch
    %9 = sbr.rel (0) target = $region5
  $region4: #{spnet_forward.7} parent=0 // pred_region
    _
  $region5: #{spnet_forward.7} parent=0 // pred_fallthru
    _
  // Predicated region
  $region6: #{spnet_forward.7} parent=0 // pred_check
    _
  $region7: #{spnet_forward.7} parent=0 // pred_check_branch
    %11 = sbr.rel (0) target = $region9
  $region8: #{spnet_forward.7} parent=0 // pred_region
    _
  $region9: #{spnet_forward.7} parent=0 // pred_fallthru
    _
  // Predicated region
  $region10: #{spnet_forward.7} parent=0 // pred_check
    _
  $region11: #{spnet_forward.7} parent=0 // pred_check_branch
    %13 = sbr.rel (0) target = $region13
  $region12: #{spnet_forward.7} parent=0 // pred_region
    _
  $region13: #{spnet_forward.7} parent=0 // pred_fallthru
    _
  %p15 = scmp.eq.s32.totalorder 0, 0
  // Predicated region
  $region14: #{spnet_forward.7} parent=0 // pred_check
    %p16 = pneg %p15
  $region15: #{spnet_forward.7} parent=0 // pred_check_branch
    %18 = sbr.rel (%p16) target = $region17
  $region16: #{spnet_forward.7} parent=0 // pred_region
    %19 = vst [vmem:[#allocation2] sm:$0xff] 0.0
    %20 = vst [vmem:[#allocation2 + $0x8] sm:$0xff] 0.0
    %21 = vst [vmem:[#allocation2 + $0x10] sm:$0xff] 0.0
    %22 = vst [vmem:[#allocation2 + $0x18] sm:$0xff] 0.0
    %23 = vst [vmem:[#allocation2 + $0x20] sm:$0xff] 0.0
    %24 = vst [vmem:[#allocation2 + $0x28] sm:$0xff] 0.0
    %25 = vst [vmem:[#allocation2 + $0x30] sm:$0xff] 0.0
    %26 = vst [vmem:[#allocation2 + $0x38] sm:$0xff] 0.0
    %27 = vst [vmem:[#allocation2 + $0x40] sm:$0xff] 0.0
    %28 = vst [vmem:[#allocation2 + $0x48] sm:$0xff] 0.0
    %29 = vst [vmem:[#allocation2 + $0x50] sm:$0xff] 0.0
    %30 = vst [vmem:[#allocation2 + $0x58] sm:$0xff] 0.0
    %31 = vst [vmem:[#allocation2 + $0x60] sm:$0xff] 0.0
    %32 = vst [vmem:[#allocation2 + $0x68] sm:$0xff] 0.0
    %33 = vst [vmem:[#allocation2 + $0x70] sm:$0xff] 0.0
    %34 = vst [vmem:[#allocation2 + $0x78] sm:$0xff] 0.0
    %35 = vst [vmem:[#allocation2 + $0x80] sm:$0xff] 0.0
    %36 = vst [vmem:[#allocation2 + $0x88] sm:$0xff] 0.0
    %37 = vst [vmem:[#allocation2 + $0x90] sm:$0xff] 0.0
    %38 = vst [vmem:[#allocation2 + $0x98] sm:$0xff] 0.0
    %39 = vst [vmem:[#allocation2 + $0xa0] sm:$0xff] 0.0
    %40 = vst [vmem:[#allocation2 + $0xa8] sm:$0xff] 0.0
    %41 = vst [vmem:[#allocation2 + $0xb0] sm:$0xff] 0.0
    %42 = vst [vmem:[#allocation2 + $0xb8] sm:$0xff] 0.0
    %43 = vst [vmem:[#allocation2 + $0xc0] sm:$0xff] 0.0
    %44 = vst [vmem:[#allocation2 + $0xc8] sm:$0xff] 0.0
    %45 = vst [vmem:[#allocation2 + $0xd0] sm:$0xff] 0.0
    %46 = vst [vmem:[#allocation2 + $0xd8] sm:$0xff] 0.0
    %47 = vst [vmem:[#allocation2 + $0xe0] sm:$0xff] 0.0
    %48 = vst [vmem:[#allocation2 + $0xe8] sm:$0xff] 0.0
    %49 = vst [vmem:[#allocation2 + $0xf0] sm:$0xff] 0.0
    %50 = vst [vmem:[#allocation2 + $0xf8] sm:$0xff] 0.0
  $region17: #{spnet_forward.7} parent=0 // pred_fallthru
    _
  %v51 = vld [vmem:[#allocation2] sm:$0xff]
  %v52 = vld [vmem:[#allocation2 + $0x8] sm:$0xff]
  %v53 = vld [vmem:[#allocation2 + $0x10] sm:$0xff]
  %v54 = vld [vmem:[#allocation2 + $0x18] sm:$0xff]
  %v55 = vld [vmem:[#allocation2 + $0x20] sm:$0xff]
  %v56 = vld [vmem:[#allocation2 + $0x28] sm:$0xff]
  %v57 = vld [vmem:[#allocation2 + $0x30] sm:$0xff]
  %v58 = vld [vmem:[#allocation2 + $0x38] sm:$0xff]
  %v59 = vld [vmem:[#allocation2 + $0x40] sm:$0xff]
  %v60 = vld [vmem:[#allocation2 + $0x48] sm:$0xff]
  %v61 = vld [vmem:[#allocation2 + $0x50] sm:$0xff]
  %v62 = vld [vmem:[#allocation2 + $0x58] sm:$0xff]
  %v63 = vld [vmem:[#allocation2 + $0x60] sm:$0xff]
  %v64 = vld [vmem:[#allocation2 + $0x68] sm:$0xff]
  %v65 = vld [vmem:[#allocation2 + $0x70] sm:$0xff]
  %v66 = vld [vmem:[#allocation2 + $0x78] sm:$0xff]
  %v67 = vld [vmem:[#allocation2 + $0x80] sm:$0xff]
  %v68 = vld [vmem:[#allocation2 + $0x88] sm:$0xff]
  %v69 = vld [vmem:[#allocation2 + $0x90] sm:$0xff]
  %v70 = vld [vmem:[#allocation2 + $0x98] sm:$0xff]
  %v71 = vld [vmem:[#allocation2 + $0xa0] sm:$0xff]
  %v72 = vld [vmem:[#allocation2 + $0xa8] sm:$0xff]
  %v73 = vld [vmem:[#allocation2 + $0xb0] sm:$0xff]
  %v74 = vld [vmem:[#allocation2 + $0xb8] sm:$0xff]
  %v75 = vld [vmem:[#allocation2 + $0xc0] sm:$0xff]
  %v76 = vld [vmem:[#allocation2 + $0xc8] sm:$0xff]
  %v77 = vld [vmem:[#allocation2 + $0xd0] sm:$0xff]
  %v78 = vld [vmem:[#allocation2 + $0xd8] sm:$0xff]
  %v79 = vld [vmem:[#allocation2 + $0xe0] sm:$0xff]
  %v80 = vld [vmem:[#allocation2 + $0xe8] sm:$0xff]
  %v81 = vld [vmem:[#allocation2 + $0xf0] sm:$0xff]
  %v82 = vld [vmem:[#allocation2 + $0xf8] sm:$0xff]
  %v83 = vld [vmem:[%s0] sm:$0xf]
  %v84 = vld [vmem:[%s0 + $0x4] sm:$0xf]
  %v85 = vld [vmem:[%s0 + $0x8] sm:$0xf]
  %v86 = vld [vmem:[%s0 + $0xc] sm:$0xf]
  %v87 = vld [vmem:[%s0 + $0x10] sm:$0xf]
  %v88 = vld [vmem:[%s0 + $0x14] sm:$0xf]
  %v89 = vld [vmem:[%s0 + $0x18] sm:$0xf]
  %v90 = vld [vmem:[%s0 + $0x1c] sm:$0xf]
  %v91 = vld [vmem:[%s0 + $0x20] sm:$0xf]
  %v92 = vld [vmem:[%s0 + $0x24] sm:$0xf]
  %v93 = vld [vmem:[%s0 + $0x28] sm:$0xf]
  %v94 = vld [vmem:[%s0 + $0x2c] sm:$0xf]
  %v95 = vld [vmem:[%s0 + $0x30] sm:$0xf]
  %v96 = vld [vmem:[%s0 + $0x34] sm:$0xf]
  %v97 = vld [vmem:[%s0 + $0x38] sm:$0xf]
  %v98 = vld [vmem:[%s0 + $0x3c] sm:$0xf]
  %v99 = vld [vmem:[%s0 + $0x40] sm:$0xf]
  %v100 = vld [vmem:[%s0 + $0x44] sm:$0xf]
  %v101 = vld [vmem:[%s0 + $0x48] sm:$0xf]
  %v102 = vld [vmem:[%s0 + $0x4c] sm:$0xf]
  %v103 = vld [vmem:[%s0 + $0x50] sm:$0xf]
  %v104 = vld [vmem:[%s0 + $0x54] sm:$0xf]
  %v105 = vld [vmem:[%s0 + $0x58] sm:$0xf]
  %v106 = vld [vmem:[%s0 + $0x5c] sm:$0xf]
  %v107 = vld [vmem:[%s0 + $0x60] sm:$0xf]
  %v108 = vld [vmem:[%s0 + $0x64] sm:$0xf]
  %v109 = vld [vmem:[%s0 + $0x68] sm:$0xf]
  %v110 = vld [vmem:[%s0 + $0x6c] sm:$0xf]
  %v111 = vld [vmem:[%s0 + $0x70] sm:$0xf]
  %v112 = vld [vmem:[%s0 + $0x74] sm:$0xf]
  %v113 = vld [vmem:[%s0 + $0x78] sm:$0xf]
  %v114 = vld [vmem:[%s0 + $0x7c] sm:$0xf]
  %v115 = vld [vmem:[%s1] sm:$0xf]
  %v116 = vld [vmem:[%s1 + $0x4] sm:$0xf]
  %v117 = vld [vmem:[%s1 + $0x8] sm:$0xf]
  %v118 = vld [vmem:[%s1 + $0xc] sm:$0xf]
  %v119 = vld [vmem:[%s1 + $0x10] sm:$0xf]
  %v120 = vld [vmem:[%s1 + $0x14] sm:$0xf]
  %v121 = vld [vmem:[%s1 + $0x18] sm:$0xf]
  %v122 = vld [vmem:[%s1 + $0x1c] sm:$0xf]
  %v123 = vld [vmem:[%s1 + $0x20] sm:$0xf]
  %v124 = vld [vmem:[%s1 + $0x24] sm:$0xf]
  %v125 = vld [vmem:[%s1 + $0x28] sm:$0xf]
  %v126 = vld [vmem:[%s1 + $0x2c] sm:$0xf]
  %v127 = vld [vmem:[%s1 + $0x30] sm:$0xf]
  %v128 = vld [vmem:[%s1 + $0x34] sm:$0xf]
  %v129 = vld [vmem:[%s1 + $0x38] sm:$0xf]
  %v130 = vld [vmem:[%s1 + $0x3c] sm:$0xf]
  %v163 = vunpack.c.l.b16 %v83
  %v164 = vunpack.c.l.b16 %v84
  %v165 = vunpack.c.l.b16 %v85
  %v166 = vunpack.c.l.b16 %v86
  %v167 = vunpack.c.l.b16 %v87
  %v168 = vunpack.c.l.b16 %v88
  %v169 = vunpack.c.l.b16 %v89
  %v170 = vunpack.c.l.b16 %v90
  %v171 = vunpack.c.l.b16 %v91
  %v172 = vunpack.c.l.b16 %v92
  %v173 = vunpack.c.l.b16 %v93
  %v174 = vunpack.c.l.b16 %v94
  %v175 = vunpack.c.l.b16 %v95
  %v176 = vunpack.c.l.b16 %v96
  %v177 = vunpack.c.l.b16 %v97
  %v178 = vunpack.c.l.b16 %v98
  %v179 = vunpack.c.l.b16 %v99
  %v180 = vunpack.c.l.b16 %v100
  %v181 = vunpack.c.l.b16 %v101
  %v182 = vunpack.c.l.b16 %v102
  %v183 = vunpack.c.l.b16 %v103
  %v184 = vunpack.c.l.b16 %v104
  %v185 = vunpack.c.l.b16 %v105
  %v186 = vunpack.c.l.b16 %v106
  %v187 = vunpack.c.l.b16 %v107
  %v188 = vunpack.c.l.b16 %v108
  %v189 = vunpack.c.l.b16 %v109
  %v190 = vunpack.c.l.b16 %v110
  %v191 = vunpack.c.l.b16 %v111
  %v192 = vunpack.c.l.b16 %v112
  %v193 = vunpack.c.l.b16 %v113
  %v194 = vunpack.c.l.b16 %v114
  %v195 = vpack.c.b16 %v164, %v163
  %v196 = vpack.c.b16 %v166, %v165
  %v197 = vpack.c.b16 %v168, %v167
  %v198 = vpack.c.b16 %v170, %v169
  %v199 = vpack.c.b16 %v172, %v171
  %v200 = vpack.c.b16 %v174, %v173
  %v201 = vpack.c.b16 %v176, %v175
  %v202 = vpack.c.b16 %v178, %v177
  %v203 = vpack.c.b16 %v180, %v179
  %v204 = vpack.c.b16 %v182, %v181
  %v205 = vpack.c.b16 %v184, %v183
  %v206 = vpack.c.b16 %v186, %v185
  %v207 = vpack.c.b16 %v188, %v187
  %v208 = vpack.c.b16 %v190, %v189
  %v209 = vpack.c.b16 %v192, %v191
  %v210 = vpack.c.b16 %v194, %v193
  %v243 = vunpack.c.l.b16 %v115
  %v244 = vunpack.c.l.b16 %v116
  %v245 = vunpack.c.l.b16 %v117
  %v246 = vunpack.c.l.b16 %v118
  %v247 = vunpack.c.l.b16 %v119
  %v248 = vunpack.c.l.b16 %v120
  %v249 = vunpack.c.l.b16 %v121
  %v250 = vunpack.c.l.b16 %v122
  %v251 = vunpack.c.l.b16 %v123
  %v252 = vunpack.c.l.b16 %v124
  %v253 = vunpack.c.l.b16 %v125
  %v254 = vunpack.c.l.b16 %v126
  %v255 = vunpack.c.l.b16 %v127
  %v256 = vunpack.c.l.b16 %v128
  %v257 = vunpack.c.l.b16 %v129
  %v258 = vunpack.c.l.b16 %v130
  %v259 = vpack.c.b16 %v244, %v243
  %v260 = vpack.c.b16 %v246, %v245
  %v261 = vpack.c.b16 %v248, %v247
  %v262 = vpack.c.b16 %v250, %v249
  %v263 = vpack.c.b16 %v252, %v251
  %v264 = vpack.c.b16 %v254, %v253
  %v265 = vpack.c.b16 %v256, %v255
  %v266 = vpack.c.b16 %v258, %v257
  %275 = vmatprep.subr.bf16.mxu0 0
  %276 = vmatpush1.bf16.msra.mxu0 %v259
  %277 = vmatprep.subr.bf16.mxu0 0
  %278 = vmatpush1.bf16.msra.mxu0 %v260
  %279 = vmatprep.subr.bf16.mxu0 0
  %280 = vmatpush1.bf16.msra.mxu0 %v261
  %281 = vmatprep.subr.bf16.mxu0 0
  %282 = vmatpush1.bf16.msra.mxu0 %v262
  %283 = vmatprep.subr.bf16.mxu0 0
  %284 = vmatpush1.bf16.msra.mxu0 %v263
  %285 = vmatprep.subr.bf16.mxu0 0
  %286 = vmatpush1.bf16.msra.mxu0 %v264
  %287 = vmatprep.subr.bf16.mxu0 0
  %288 = vmatpush1.bf16.msra.mxu0 %v265
  %289 = vmatprep.subr.bf16.mxu0 0
  %290 = vmatpush1.bf16.msra.mxu0 %v266
  %291 = vmatprep.subr.bf16.mxu0 0
  %292 = vmatpush1.bf16.msra.mxu0 0
  %293 = vmatprep.subr.bf16.mxu0 0
  %294 = vmatpush1.bf16.msra.mxu0 0
  %295 = vmatprep.subr.bf16.mxu0 0
  %296 = vmatpush1.bf16.msra.mxu0 0
  %297 = vmatprep.subr.bf16.mxu0 0
  %298 = vmatpush1.bf16.msra.mxu0 0
  %299 = vmatprep.subr.bf16.mxu0 0
  %300 = vmatpush1.bf16.msra.mxu0 0
  %301 = vmatprep.subr.bf16.mxu0 0
  %302 = vmatpush1.bf16.msra.mxu0 0
  %303 = vmatprep.subr.bf16.mxu0 0
  %304 = vmatpush1.bf16.msra.mxu0 0
  %305 = vmatprep.subr.bf16.mxu0 0
  %306 = vmatpush1.bf16.msra.mxu0 0
  %307 = vmatprep.mubr.bf16.mxu0 0
  %308 = vmatmul.mubr.bf16.gmra.mrb[0].mxu0 %v195
  %v309 = vpop.f32.mrb[0].mxu0
  %v310 = vadd.f32 0.0, %v309
  %v311 = vpop.f32.mrb[0].mxu0
  %v312 = vpop.f32.mrb[0].mxu0
  %v313 = vadd.f32 0.0, %v312
  %v314 = vpop.f32.mrb[0].mxu0
  %315 = vmatprep.mubr.bf16.mxu0 0
  %316 = vmatmul.mubr.bf16.gmra.mrb[0].mxu0 %v196
  %v317 = vpop.f32.mrb[0].mxu0
  %v318 = vadd.f32 0.0, %v317
  %v319 = vpop.f32.mrb[0].mxu0
  %v320 = vpop.f32.mrb[0].mxu0
  %v321 = vadd.f32 0.0, %v320
  %v322 = vpop.f32.mrb[0].mxu0
  %323 = vmatprep.mubr.bf16.mxu0 0
  %324 = vmatmul.mubr.bf16.gmra.mrb[0].mxu0 %v197
  %v325 = vpop.f32.mrb[0].mxu0
  %v326 = vadd.f32 0.0, %v325
  %v327 = vpop.f32.mrb[0].mxu0
  %v328 = vpop.f32.mrb[0].mxu0
  %v329 = vadd.f32 0.0, %v328
  %v330 = vpop.f32.mrb[0].mxu0
  %331 = vmatprep.mubr.bf16.mxu0 0
  %332 = vmatmul.mubr.bf16.gmra.mrb[0].mxu0 %v198
  %v333 = vpop.f32.mrb[0].mxu0
  %v334 = vadd.f32 0.0, %v333
  %v335 = vpop.f32.mrb[0].mxu0
  %v336 = vpop.f32.mrb[0].mxu0
  %v337 = vadd.f32 0.0, %v336
  %v338 = vpop.f32.mrb[0].mxu0
  %339 = vmatprep.mubr.bf16.mxu0 0
  %340 = vmatmul.mubr.bf16.gmra.mrb[0].mxu0 %v199
  %v341 = vpop.f32.mrb[0].mxu0
  %v342 = vadd.f32 0.0, %v341
  %v343 = vpop.f32.mrb[0].mxu0
  %v344 = vpop.f32.mrb[0].mxu0
  %v345 = vadd.f32 0.0, %v344
  %v346 = vpop.f32.mrb[0].mxu0
  %347 = vmatprep.mubr.bf16.mxu0 0
  %348 = vmatmul.mubr.bf16.gmra.mrb[0].mxu0 %v200
  %v349 = vpop.f32.mrb[0].mxu0
  %v350 = vadd.f32 0.0, %v349
  %v351 = vpop.f32.mrb[0].mxu0
  %v352 = vpop.f32.mrb[0].mxu0
  %v353 = vadd.f32 0.0, %v352
  %v354 = vpop.f32.mrb[0].mxu0
  %355 = vmatprep.mubr.bf16.mxu0 0
  %356 = vmatmul.mubr.bf16.gmra.mrb[0].mxu0 %v201
  %v357 = vpop.f32.mrb[0].mxu0
  %v358 = vadd.f32 0.0, %v357
  %v359 = vpop.f32.mrb[0].mxu0
  %v360 = vpop.f32.mrb[0].mxu0
  %v361 = vadd.f32 0.0, %v360
  %v362 = vpop.f32.mrb[0].mxu0
  %363 = vmatprep.mubr.bf16.mxu0 0
  %364 = vmatmul.mubr.bf16.gmra.mrb[0].mxu0 %v202
  %v365 = vpop.f32.mrb[0].mxu0
  %v366 = vadd.f32 0.0, %v365
  %v367 = vpop.f32.mrb[0].mxu0
  %v368 = vpop.f32.mrb[0].mxu0
  %v369 = vadd.f32 0.0, %v368
  %v370 = vpop.f32.mrb[0].mxu0
  %371 = vmatprep.mubr.bf16.mxu0 0
  %372 = vmatmul.mubr.bf16.gmra.mrb[0].mxu0 %v203
  %v373 = vpop.f32.mrb[0].mxu0
  %v374 = vadd.f32 0.0, %v373
  %v375 = vpop.f32.mrb[0].mxu0
  %v376 = vpop.f32.mrb[0].mxu0
  %v377 = vadd.f32 0.0, %v376
  %v378 = vpop.f32.mrb[0].mxu0
  %379 = vmatprep.mubr.bf16.mxu0 0
  %380 = vmatmul.mubr.bf16.gmra.mrb[0].mxu0 %v204
  %v381 = vpop.f32.mrb[0].mxu0
  %v382 = vadd.f32 0.0, %v381
  %v383 = vpop.f32.mrb[0].mxu0
  %v384 = vpop.f32.mrb[0].mxu0
  %v385 = vadd.f32 0.0, %v384
  %v386 = vpop.f32.mrb[0].mxu0
  %387 = vmatprep.mubr.bf16.mxu0 0
  %388 = vmatmul.mubr.bf16.gmra.mrb[0].mxu0 %v205
  %v389 = vpop.f32.mrb[0].mxu0
  %v390 = vadd.f32 0.0, %v389
  %v391 = vpop.f32.mrb[0].mxu0
  %v392 = vpop.f32.mrb[0].mxu0
  %v393 = vadd.f32 0.0, %v392
  %v394 = vpop.f32.mrb[0].mxu0
  %395 = vmatprep.mubr.bf16.mxu0 0
  %396 = vmatmul.mubr.bf16.gmra.mrb[0].mxu0 %v206
  %v397 = vpop.f32.mrb[0].mxu0
  %v398 = vadd.f32 0.0, %v397
  %v399 = vpop.f32.mrb[0].mxu0
  %v400 = vpop.f32.mrb[0].mxu0
  %v401 = vadd.f32 0.0, %v400
  %v402 = vpop.f32.mrb[0].mxu0
  %403 = vmatprep.mubr.bf16.mxu0 0
  %404 = vmatmul.mubr.bf16.gmra.mrb[0].mxu0 %v207
  %v405 = vpop.f32.mrb[0].mxu0
  %v406 = vadd.f32 0.0, %v405
  %v407 = vpop.f32.mrb[0].mxu0
  %v408 = vpop.f32.mrb[0].mxu0
  %v409 = vadd.f32 0.0, %v408
  %v410 = vpop.f32.mrb[0].mxu0
  %411 = vmatprep.mubr.bf16.mxu0 0
  %412 = vmatmul.mubr.bf16.gmra.mrb[0].mxu0 %v208
  %v413 = vpop.f32.mrb[0].mxu0
  %v414 = vadd.f32 0.0, %v413
  %v415 = vpop.f32.mrb[0].mxu0
  %v416 = vpop.f32.mrb[0].mxu0
  %v417 = vadd.f32 0.0, %v416
  %v418 = vpop.f32.mrb[0].mxu0
  %419 = vmatprep.mubr.bf16.mxu0 0
  %420 = vmatmul.mubr.bf16.gmra.mrb[0].mxu0 %v209
  %v421 = vpop.f32.mrb[0].mxu0
  %v422 = vadd.f32 0.0, %v421
  %v423 = vpop.f32.mrb[0].mxu0
  %v424 = vpop.f32.mrb[0].mxu0
  %v425 = vadd.f32 0.0, %v424
  %v426 = vpop.f32.mrb[0].mxu0
  %427 = vmatprep.mubr.bf16.mxu0 0
  %428 = vmatmul.mubr.bf16.gmra.mrb[0].mxu0 %v210
  %v429 = vpop.f32.mrb[0].mxu0
  %v430 = vadd.f32 0.0, %v429
  %v431 = vpop.f32.mrb[0].mxu0
  %v432 = vpop.f32.mrb[0].mxu0
  %v433 = vadd.f32 0.0, %v432
  %v434 = vpop.f32.mrb[0].mxu0
  %435 = vdwg.mxu0
  %v436 = vadd.f32 %v51, %v310
  %v437 = vadd.f32 %v52, %v313
  %v438 = vadd.f32 %v53, %v318
  %v439 = vadd.f32 %v54, %v321
  %v440 = vadd.f32 %v55, %v326
  %v441 = vadd.f32 %v56, %v329
  %v442 = vadd.f32 %v57, %v334
  %v443 = vadd.f32 %v58, %v337
  %v444 = vadd.f32 %v59, %v342
  %v445 = vadd.f32 %v60, %v345
  %v446 = vadd.f32 %v61, %v350
  %v447 = vadd.f32 %v62, %v353
  %v448 = vadd.f32 %v63, %v358
  %v449 = vadd.f32 %v64, %v361
  %v450 = vadd.f32 %v65, %v366
  %v451 = vadd.f32 %v66, %v369
  %v452 = vadd.f32 %v67, %v374
  %v453 = vadd.f32 %v68, %v377
  %v454 = vadd.f32 %v69, %v382
  %v455 = vadd.f32 %v70, %v385
  %v456 = vadd.f32 %v71, %v390
  %v457 = vadd.f32 %v72, %v393
  %v458 = vadd.f32 %v73, %v398
  %v459 = vadd.f32 %v74, %v401
  %v460 = vadd.f32 %v75, %v406
  %v461 = vadd.f32 %v76, %v409
  %v462 = vadd.f32 %v77, %v414
  %v463 = vadd.f32 %v78, %v417
  %v464 = vadd.f32 %v79, %v422
  %v465 = vadd.f32 %v80, %v425
  %v466 = vadd.f32 %v81, %v430
  %v467 = vadd.f32 %v82, %v433
  %468 = vst [vmem:[#allocation2] sm:$0xff] %v436
  %469 = vst [vmem:[#allocation2 + $0x8] sm:$0xff] %v437
  %470 = vst [vmem:[#allocation2 + $0x10] sm:$0xff] %v438
  %471 = vst [vmem:[#allocation2 + $0x18] sm:$0xff] %v439
  %472 = vst [vmem:[#allocation2 + $0x20] sm:$0xff] %v440
  %473 = vst [vmem:[#allocation2 + $0x28] sm:$0xff] %v441
  %474 = vst [vmem:[#allocation2 + $0x30] sm:$0xff] %v442
  %475 = vst [vmem:[#allocation2 + $0x38] sm:$0xff] %v443
  %476 = vst [vmem:[#allocation2 + $0x40] sm:$0xff] %v444
  %477 = vst [vmem:[#allocation2 + $0x48] sm:$0xff] %v445
  %478 = vst [vmem:[#allocation2 + $0x50] sm:$0xff] %v446
  %479 = vst [vmem:[#allocation2 + $0x58] sm:$0xff] %v447
  %480 = vst [vmem:[#allocation2 + $0x60] sm:$0xff] %v448
  %481 = vst [vmem:[#allocation2 + $0x68] sm:$0xff] %v449
  %482 = vst [vmem:[#allocation2 + $0x70] sm:$0xff] %v450
  %483 = vst [vmem:[#allocation2 + $0x78] sm:$0xff] %v451
  %484 = vst [vmem:[#allocation2 + $0x80] sm:$0xff] %v452
  %485 = vst [vmem:[#allocation2 + $0x88] sm:$0xff] %v453
  %486 = vst [vmem:[#allocation2 + $0x90] sm:$0xff] %v454
  %487 = vst [vmem:[#allocation2 + $0x98] sm:$0xff] %v455
  %488 = vst [vmem:[#allocation2 + $0xa0] sm:$0xff] %v456
  %489 = vst [vmem:[#allocation2 + $0xa8] sm:$0xff] %v457
  %490 = vst [vmem:[#allocation2 + $0xb0] sm:$0xff] %v458
  %491 = vst [vmem:[#allocation2 + $0xb8] sm:$0xff] %v459
  %492 = vst [vmem:[#allocation2 + $0xc0] sm:$0xff] %v460
  %493 = vst [vmem:[#allocation2 + $0xc8] sm:$0xff] %v461
  %494 = vst [vmem:[#allocation2 + $0xd0] sm:$0xff] %v462
  %495 = vst [vmem:[#allocation2 + $0xd8] sm:$0xff] %v463
  %496 = vst [vmem:[#allocation2 + $0xe0] sm:$0xff] %v464
  %497 = vst [vmem:[#allocation2 + $0xe8] sm:$0xff] %v465
  %498 = vst [vmem:[#allocation2 + $0xf0] sm:$0xff] %v466
  %499 = vst [vmem:[#allocation2 + $0xf8] sm:$0xff] %v467
  // Predicated region
  $region18: #{spnet_forward.7} parent=0 // pred_check
    %p500 = pneg %p15
  $region19: #{spnet_forward.7} parent=0 // pred_check_branch
    %502 = sbr.rel (%p500) target = $region21
  $region20: #{spnet_forward.7} parent=0 // pred_region
    %v503 = vld [vmem:[#allocation2] sm:$0xff]
    %v504 = vld [vmem:[#allocation2 + $0x8] sm:$0xff]
    %v505 = vld [vmem:[#allocation2 + $0x10] sm:$0xff]
    %v506 = vld [vmem:[#allocation2 + $0x18] sm:$0xff]
    %v507 = vld [vmem:[#allocation2 + $0x20] sm:$0xff]
    %v508 = vld [vmem:[#allocation2 + $0x28] sm:$0xff]
    %v509 = vld [vmem:[#allocation2 + $0x30] sm:$0xff]
    %v510 = vld [vmem:[#allocation2 + $0x38] sm:$0xff]
    %v511 = vld [vmem:[#allocation2 + $0x40] sm:$0xff]
    %v512 = vld [vmem:[#allocation2 + $0x48] sm:$0xff]
    %v513 = vld [vmem:[#allocation2 + $0x50] sm:$0xff]
    %v514 = vld [vmem:[#allocation2 + $0x58] sm:$0xff]
    %v515 = vld [vmem:[#allocation2 + $0x60] sm:$0xff]
    %v516 = vld [vmem:[#allocation2 + $0x68] sm:$0xff]
    %v517 = vld [vmem:[#allocation2 + $0x70] sm:$0xff]
    %v518 = vld [vmem:[#allocation2 + $0x78] sm:$0xff]
    %v519 = vld [vmem:[#allocation2 + $0x80] sm:$0xff]
    %v520 = vld [vmem:[#allocation2 + $0x88] sm:$0xff]
    %v521 = vld [vmem:[#allocation2 + $0x90] sm:$0xff]
    %v522 = vld [vmem:[#allocation2 + $0x98] sm:$0xff]
    %v523 = vld [vmem:[#allocation2 + $0xa0] sm:$0xff]
    %v524 = vld [vmem:[#allocation2 + $0xa8] sm:$0xff]
    %v525 = vld [vmem:[#allocation2 + $0xb0] sm:$0xff]
    %v526 = vld [vmem:[#allocation2 + $0xb8] sm:$0xff]
    %v527 = vld [vmem:[#allocation2 + $0xc0] sm:$0xff]
    %v528 = vld [vmem:[#allocation2 + $0xc8] sm:$0xff]
    %v529 = vld [vmem:[#allocation2 + $0xd0] sm:$0xff]
    %v530 = vld [vmem:[#allocation2 + $0xd8] sm:$0xff]
    %v531 = vld [vmem:[#allocation2 + $0xe0] sm:$0xff]
    %v532 = vld [vmem:[#allocation2 + $0xe8] sm:$0xff]
    %v533 = vld [vmem:[#allocation2 + $0xf0] sm:$0xff]
    %v534 = vld [vmem:[#allocation2 + $0xf8] sm:$0xff]
    %v535 = vld [vmem:[%s2] sm:$0x1]
    %v537 = vlaneseq
    %v538 = vshrl.u32 %v537, 7
    %v539 = vsub.s32 0, %v538
    %v540 = vrot.slane %v535, %v539
    %v542 = vadd.f32 %v503, %v540
    %v543 = vadd.f32 %v504, %v540
    %v544 = vadd.f32 %v505, %v540
    %v545 = vadd.f32 %v506, %v540
    %v546 = vadd.f32 %v507, %v540
    %v547 = vadd.f32 %v508, %v540
    %v548 = vadd.f32 %v509, %v540
    %v549 = vadd.f32 %v510, %v540
    %v550 = vadd.f32 %v511, %v540
    %v551 = vadd.f32 %v512, %v540
    %v552 = vadd.f32 %v513, %v540
    %v553 = vadd.f32 %v514, %v540
    %v554 = vadd.f32 %v515, %v540
    %v555 = vadd.f32 %v516, %v540
    %v556 = vadd.f32 %v517, %v540
    %v557 = vadd.f32 %v518, %v540
    %v558 = vadd.f32 %v519, %v540
    %v559 = vadd.f32 %v520, %v540
    %v560 = vadd.f32 %v521, %v540
    %v561 = vadd.f32 %v522, %v540
    %v562 = vadd.f32 %v523, %v540
    %v563 = vadd.f32 %v524, %v540
    %v564 = vadd.f32 %v525, %v540
    %v565 = vadd.f32 %v526, %v540
    %v566 = vadd.f32 %v527, %v540
    %v567 = vadd.f32 %v528, %v540
    %v568 = vadd.f32 %v529, %v540
    %v569 = vadd.f32 %v530, %v540
    %v570 = vadd.f32 %v531, %v540
    %v571 = vadd.f32 %v532, %v540
    %v572 = vadd.f32 %v533, %v540
    %v573 = vadd.f32 %v534, %v540
    %574 = vst [vmem:[%s3] sm:$0xff] %v542
    %575 = vst [vmem:[%s3 + $0x8] sm:$0xff] %v543
    %576 = vst [vmem:[%s3 + $0x10] sm:$0xff] %v544
    %577 = vst [vmem:[%s3 + $0x18] sm:$0xff] %v545
    %578 = vst [vmem:[%s3 + $0x20] sm:$0xff] %v546
    %579 = vst [vmem:[%s3 + $0x28] sm:$0xff] %v547
    %580 = vst [vmem:[%s3 + $0x30] sm:$0xff] %v548
    %581 = vst [vmem:[%s3 + $0x38] sm:$0xff] %v549
    %582 = vst [vmem:[%s3 + $0x40] sm:$0xff] %v550
    %583 = vst [vmem:[%s3 + $0x48] sm:$0xff] %v551
    %584 = vst [vmem:[%s3 + $0x50] sm:$0xff] %v552
    %585 = vst [vmem:[%s3 + $0x58] sm:$0xff] %v553
    %586 = vst [vmem:[%s3 + $0x60] sm:$0xff] %v554
    %587 = vst [vmem:[%s3 + $0x68] sm:$0xff] %v555
    %588 = vst [vmem:[%s3 + $0x70] sm:$0xff] %v556
    %589 = vst [vmem:[%s3 + $0x78] sm:$0xff] %v557
    %590 = vst [vmem:[%s3 + $0x80] sm:$0xff] %v558
    %591 = vst [vmem:[%s3 + $0x88] sm:$0xff] %v559
    %592 = vst [vmem:[%s3 + $0x90] sm:$0xff] %v560
    %593 = vst [vmem:[%s3 + $0x98] sm:$0xff] %v561
    %594 = vst [vmem:[%s3 + $0xa0] sm:$0xff] %v562
    %595 = vst [vmem:[%s3 + $0xa8] sm:$0xff] %v563
    %596 = vst [vmem:[%s3 + $0xb0] sm:$0xff] %v564
    %597 = vst [vmem:[%s3 + $0xb8] sm:$0xff] %v565
    %598 = vst [vmem:[%s3 + $0xc0] sm:$0xff] %v566
    %599 = vst [vmem:[%s3 + $0xc8] sm:$0xff] %v567
    %600 = vst [vmem:[%s3 + $0xd0] sm:$0xff] %v568
    %601 = vst [vmem:[%s3 + $0xd8] sm:$0xff] %v569
    %602 = vst [vmem:[%s3 + $0xe0] sm:$0xff] %v570
    %603 = vst [vmem:[%s3 + $0xe8] sm:$0xff] %v571
    %604 = vst [vmem:[%s3 + $0xf0] sm:$0xff] %v572
    %605 = vst [vmem:[%s3 + $0xf8] sm:$0xff] %v573
  $region21: #{spnet_forward.7} parent=0 // pred_fallthru
    _
  // Predicated region
  $region22: #{spnet_forward.7} parent=0 // pred_check
    _
  $region23: #{spnet_forward.7} parent=0 // pred_check_branch
    %607 = sbr.rel (0) target = $region25
  $region24: #{spnet_forward.7} parent=0 // pred_region
    _
  $region25: #{spnet_forward.7} parent=0 // pred_fallthru
    _
  // Predicated region
  $region26: #{spnet_forward.7} parent=0 // pred_check
    _
  $region27: #{spnet_forward.7} parent=0 // pred_check_branch
    %609 = sbr.rel (0) target = $region29
  $region28: #{spnet_forward.7} parent=0 // pred_region
    _
  $region29: #{spnet_forward.7} parent=0 // pred_fallthru
    _

// kernel: spnet_forward.9
$region0: #{spnet_forward.9}
  #allocation0 [shape = 'u32[]', space=smem, size = 0x4, offset = 0x4, fixed_abs, tag = 'smem constant byte address 0x4 - core index']
  #allocation1 [shape = 'u32[144,128]{1,0:T(1,128)}', space=vmem, size = 0x12000, scoped, tag = 'internal scratch']
  %s0 = inlined_call_operand.vmem [shape: bf16[4,64,16], index: 0, kind: input, shape index: {}]
  %s1 = inlined_call_operand.vmem [shape: bf16[4,16,64], index: 1, kind: input, shape index: {}]
  %s2 = inlined_call_operand.vmem [shape: f32[4,5,64], index: 2, kind: input, shape index: {}]
  %s3 = inlined_call_operand.vmem [shape: f32[4,5,64], index: 3, kind: output, shape index: {}]
  %s4 = sld [smem:[#allocation0]]
  $region45: #{spnet_forward.9} parent=0
    _
  %s6 = ssub.s32 1, %s4
  %s7 = scalar_select 0, %s6, %s4
  loop: start=0, step=1, limit=6
  $region2: #{spnet_forward.9} parent=0 // loop_pre_header
    _
  $region3: #{spnet_forward.9} parent=0 // loop_header
    %s9 = sphi 0, %s13
    %p10 = scmp.ge.s32.totalorder %s9, 6
    %s16 = sphi 0, %s28
    %s17 = sphi 0, %s24
    %s18 = sphi 0, %s16
    %s19 = sphi 0, %s17
    %s20 = sphi 0, %s18
    %s21 = sphi 0, %s19
    %s31 = sphi 0, %s33
    %s34 = sphi 0, %s31
    %s35 = sphi 0, %s34
    %s51 = sphi 0, %s35
    %s59 = sphi 0, %s61
    %s62 = sphi 0, %s59
    %s63 = sphi 0, %s62
    %s79 = sphi 0, %s63
    %s85 = sphi 0, %s87
    %s88 = sphi 0, %s85
    %s89 = sphi 0, %s88
    %s105 = sphi 0, %s89
    %s113 = sphi 0, %s115
    %s116 = sphi 0, %s113
    %s117 = sphi 0, %s116
    %s133 = sphi 0, %s117
  $region4: #{spnet_forward.9} parent=0 // loop_header_branch
    %12 = sbr.rel (%p10) target = $region8
  $region5: #{spnet_forward.9} parent=0 // loop_body
    %s14 = ssub.s32 %s9, 1
    %s15 = ssub.s32 %s9, 2
    %s22 = sadd.s32 1, %s17
    %p23 = scmp.ge.s32.totalorder %s22, 1
    %s24 = scalar_select %p23, 0, %s22
    %s25 = sadd.s32 1, %s16
    %s26 = scalar_select %p23, %s25, %s16
    %p27 = scmp.ge.s32.totalorder %s26, 4
    %s28 = scalar_select %p27, 0, %s26
    %s29 = ssub.s32 %s16, %s28
    %p30 = scmp.eq.s32.totalorder %s29, 0
    %s32 = sadd.s32 %s31, 1
    %s33 = scalar_select %p30, %s31, %s32
    %p36 = pneg %p30
    %p37 = scmp.eq.s32.totalorder %s9, 3
    %p38 = por %p36, %p37
    %p39 = scmp.ne.s32.totalorder %s31, %s34
    %p40 = scmp.eq.s32.totalorder %s9, 0
    %p41 = por %p39, %p40
    %p42 = scmp.ne.s32.totalorder %s31, %s34
    %p43 = scmp.eq.s32.totalorder %s14, 3
    %p44 = por %p42, %p43
    %p45 = scmp.ne.s32.totalorder %s34, %s35
    %p46 = scmp.eq.s32.totalorder %s14, 0
    %p47 = por %p45, %p46
    %p48 = scmp.ne.s32.totalorder %s34, %s35
    %p49 = scmp.eq.s32.totalorder %s15, 3
    %p50 = por %p48, %p49
    %p52 = scmp.ne.s32.totalorder %s35, %s51
    %p53 = scmp.eq.s32.totalorder %s15, 0
    %p54 = por %p52, %p53
    %s55 = ssub.s32 %s16, %s28
    %s56 = ssub.s32 %s17, %s24
    %s57 = sor.u32 %s55, %s56
    %p58 = scmp.eq.s32.totalorder %s57, 0
    %s60 = sadd.s32 %s59, 1
    %s61 = scalar_select %p58, %s59, %s60
    %p64 = pneg %p58
    %p65 = scmp.eq.s32.totalorder %s9, 3
    %p66 = por %p64, %p65
    %p67 = scmp.ne.s32.totalorder %s59, %s62
    %p68 = scmp.eq.s32.totalorder %s9, 0
    %p69 = por %p67, %p68
    %p70 = scmp.ne.s32.totalorder %s59, %s62
    %p71 = scmp.eq.s32.totalorder %s14, 3
    %p72 = por %p70, %p71
    %p73 = scmp.ne.s32.totalorder %s62, %s63
    %p74 = scmp.eq.s32.totalorder %s14, 0
    %p75 = por %p73, %p74
    %p76 = scmp.ne.s32.totalorder %s62, %s63
    %p77 = scmp.eq.s32.totalorder %s15, 3
    %p78 = por %p76, %p77
    %p80 = scmp.ne.s32.totalorder %s63, %s79
    %p81 = scmp.eq.s32.totalorder %s15, 0
    %p82 = por %p80, %p81
    %s83 = ssub.s32 %s16, %s28
    %p84 = scmp.eq.s32.totalorder %s83, 0
    %s86 = sadd.s32 %s85, 1
    %s87 = scalar_select %p84, %s85, %s86
    %p90 = pneg %p84
    %p91 = scmp.eq.s32.totalorder %s9, 3
    %p92 = por %p90, %p91
    %p93 = scmp.ne.s32.totalorder %s85, %s88
    %p94 = scmp.eq.s32.totalorder %s9, 0
    %p95 = por %p93, %p94
    %p96 = scmp.ne.s32.totalorder %s85, %s88
    %p97 = scmp.eq.s32.totalorder %s14, 3
    %p98 = por %p96, %p97
    %p99 = scmp.ne.s32.totalorder %s88, %s89
    %p100 = scmp.eq.s32.totalorder %s14, 0
    %p101 = por %p99, %p100
    %p102 = scmp.ne.s32.totalorder %s88, %s89
    %p103 = scmp.eq.s32.totalorder %s15, 3
    %p104 = por %p102, %p103
    %p106 = scmp.ne.s32.totalorder %s89, %s105
    %p107 = scmp.eq.s32.totalorder %s15, 0
    %p108 = por %p106, %p107
    %s109 = ssub.s32 %s16, %s28
    %s110 = ssub.s32 %s17, %s24
    %s111 = sor.u32 %s109, %s110
    %p112 = scmp.eq.s32.totalorder %s111, 0
    %s114 = sadd.s32 %s113, 1
    %s115 = scalar_select %p112, %s113, %s114
    %p118 = pneg %p112
    %p119 = scmp.eq.s32.totalorder %s9, 3
    %p120 = por %p118, %p119
    %p121 = scmp.ne.s32.totalorder %s113, %s116
    %p122 = scmp.eq.s32.totalorder %s9, 0
    %p123 = por %p121, %p122
    %p124 = scmp.ne.s32.totalorder %s113, %s116
    %p125 = scmp.eq.s32.totalorder %s14, 3
    %p126 = por %p124, %p125
    %p127 = scmp.ne.s32.totalorder %s116, %s117
    %p128 = scmp.eq.s32.totalorder %s14, 0
    %p129 = por %p127, %p128
    %p130 = scmp.ne.s32.totalorder %s116, %s117
    %p131 = scmp.eq.s32.totalorder %s15, 3
    %p132 = por %p130, %p131
    %p134 = scmp.ne.s32.totalorder %s117, %s133
    %p135 = scmp.eq.s32.totalorder %s15, 0
    %p136 = por %p134, %p135
    %p137 = scmp.le.s32.totalorder 1, %s9
    %p138 = scmp.lt.s32.totalorder %s9, 5
    %p139 = pnand %p137, %p138
    %p140 = pneg %p139
    // Predicated region
    $region9: #{spnet_forward.9} parent=5 // pred_check
      _
    $region10: #{spnet_forward.9} parent=5 // pred_check_branch
      %142 = sbr.rel (%p139) target = $region12
    $region11: #{spnet_forward.9} parent=5 // pred_region
      %s143 = ssub.s32 %s9, 1
    $region12: #{spnet_forward.9} parent=5 // pred_fallthru
      _
    %p144 = scmp.lt.s32.totalorder %s9, 4
    // Predicated region
    $region13: #{spnet_forward.9} parent=5 // pred_check
      %p145 = pneg %p144
    $region14: #{spnet_forward.9} parent=5 // pred_check_branch
      %147 = sbr.rel (%p145) target = $region16
    $region15: #{spnet_forward.9} parent=5 // pred_region
      // Predicated region
      $region17: #{spnet_forward.9} parent=15 // pred_check
        %p148 = pneg %p41
      $region18: #{spnet_forward.9} parent=15 // pred_check_branch
        %150 = sbr.rel (%p148) target = $region20
      $region19: #{spnet_forward.9} parent=15 // pred_region
        %p151 = scmp.lt.s32.totalorder %s16, 3
        %s152 = scalar_select %p151, %s16, 3
        %s153 = smul.addr %s152, 8
        %s154 = smul.addr %s153, 4
        %s155 = scalar_lea.vmem %s0, %s154
      $region20: #{spnet_forward.9} parent=15 // pred_fallthru
        _
      // Predicated region
      $region21: #{spnet_forward.9} parent=15 // pred_check
        %p156 = pneg %p69
      $region22: #{spnet_forward.9} parent=15 // pred_check_branch
        %158 = sbr.rel (%p156) target = $region24
      $region23: #{spnet_forward.9} parent=15 // pred_region
        %p159 = scmp.lt.s32.totalorder %s16, 3
        %s160 = scalar_select %p159, %s16, 3
        %p161 = scmp.lt.s32.totalorder %s17, 0
        %s162 = scalar_select %p161, %s17, 0
        %s163 = smul.addr %s160, 2
        %s164 = sadd.s32 %s162, %s163
        %s165 = smul.addr %s164, 4
        %s166 = scalar_lea.vmem %s1, %s165
      $region24: #{spnet_forward.9} parent=15 // pred_fallthru
        _
      // Predicated region
      $region25: #{spnet_forward.9} parent=15 // pred_check
        %p167 = pneg %p95
      $region26: #{spnet_forward.9} parent=15 // pred_check_branch
        %169 = sbr.rel (%p167) target = $region28
      $region27: #{spnet_forward.9} parent=15 // pred_region
        %p170 = scmp.lt.s32.totalorder %s16, 3
        %s171 = scalar_select %p170, %s16, 3
        %s172 = smul.addr %s171, 8
        %s173 = scalar_lea.vmem %s2, %s172
      $region28: #{spnet_forward.9} parent=15 // pred_fallthru
        _
    $region16: #{spnet_forward.9} parent=5 // pred_fallthru
      _
    %p174 = scmp.le.s32.totalorder 1, %s9
    %p175 = scmp.lt.s32.totalorder %s9, 5
    %p176 = pnand %p174, %p175
    %p177 = pneg %p176
    // Predicated region
    $region29: #{spnet_forward.9} parent=5 // pred_check
      _
    $region30: #{spnet_forward.9} parent=5 // pred_check_branch
      %179 = sbr.rel (%p176) target = $region32
    $region31: #{spnet_forward.9} parent=5 // pred_region
      %s180 = ssub.s32 %s9, 1
      %p181 = scmp.lt.s32.totalorder %s18, 3
      %s182 = scalar_select %p181, %s18, 3
      %s183 = smul.addr %s182, 8
      %s184 = smul.addr %s183, 4
      %s185 = scalar_lea.vmem %s0, %s184
      %p186 = pneg %p47
      %p187 = pneg %p44
      %p188 = scmp.lt.s32.totalorder %s18, 3
      %s189 = scalar_select %p188, %s18, 3
      %p190 = scmp.lt.s32.totalorder %s19, 0
      %s191 = scalar_select %p190, %s19, 0
      %s192 = smul.addr %s189, 2
      %s193 = sadd.s32 %s191, %s192
      %s194 = smul.addr %s193, 4
      %s195 = scalar_lea.vmem %s1, %s194
      %p196 = pneg %p75
      %p197 = pneg %p72
      %p198 = scmp.lt.s32.totalorder %s18, 3
      %s199 = scalar_select %p198, %s18, 3
      %s200 = smul.addr %s199, 8
      %s201 = scalar_lea.vmem %s2, %s200
      %p202 = pneg %p101
      %p203 = pneg %p98
      %p204 = pneg %p129
      %p205 = pneg %p126
      %p206 = scmp.lt.s32.totalorder %s18, 3
      %s207 = scalar_select %p206, %s18, 3
      %p208 = scmp.lt.s32.totalorder %s19, 0
      %s209 = scalar_select %p208, %s19, 0
      %s210 = sadd.s32 %s209, %s207
      %s211 = smul.addr %s210, 8
      %s212 = scalar_lea.vmem %s3, %s211
      %p213 = scmp.lt.s32.totalorder %s18, 3
      %s214 = scalar_select %p213, %s18, 3
      %s215 = smul.addr %s214, 8
      %s216 = smul.addr %s215, 4
      %s217 = scalar_lea.vmem %s0, %s216
      %p218 = scmp.lt.s32.totalorder %s18, 3
      %s219 = scalar_select %p218, %s18, 3
      %p220 = scmp.lt.s32.totalorder %s19, 0
      %s221 = scalar_select %p220, %s19, 0
      %s222 = smul.addr %s219, 2
      %s223 = sadd.s32 %s221, %s222
      %s224 = smul.addr %s223, 4
      %s225 = scalar_lea.vmem %s1, %s224
      %p226 = scmp.lt.s32.totalorder %s18, 3
      %s227 = scalar_select %p226, %s18, 3
      %s228 = smul.addr %s227, 8
      %s229 = scalar_lea.vmem %s2, %s228
      %p230 = scmp.lt.s32.totalorder %s18, 3
      %s231 = scalar_select %p230, %s18, 3
      %p232 = scmp.lt.s32.totalorder %s19, 0
      %s233 = scalar_select %p232, %s19, 0
      %s234 = sadd.s32 %s233, %s231
      %s235 = smul.addr %s234, 8
      %s236 = scalar_lea.vmem %s3, %s235
      %v238 = vld [vmem:[%s217] sm:$0xf]
      %v239 = vld [vmem:[%s217 + $0x4] sm:$0xf]
      %v240 = vld [vmem:[%s217 + $0x8] sm:$0xf]
      %v241 = vld [vmem:[%s217 + $0xc] sm:$0xf]
      %v242 = vld [vmem:[%s217 + $0x10] sm:$0xf]
      %v243 = vld [vmem:[%s217 + $0x14] sm:$0xf]
      %v244 = vld [vmem:[%s217 + $0x18] sm:$0xf]
      %v245 = vld [vmem:[%s217 + $0x1c] sm:$0xf]
      %v246 = vld [vmem:[%s225] sm:$0xf]
      %v247 = vld [vmem:[%s225 + $0x4] sm:$0xf]
      %v248 = vld [vmem:[%s229] sm:$0x1f]
      %v257 = vunpack.c.l.b16 %v238
      %v258 = vunpack.c.l.b16 %v239
      %v259 = vunpack.c.l.b16 %v240
      %v260 = vunpack.c.l.b16 %v241
      %v261 = vunpack.c.l.b16 %v242
      %v262 = vunpack.c.l.b16 %v243
      %v263 = vunpack.c.l.b16 %v244
      %v264 = vunpack.c.l.b16 %v245
      %v265 = vpack.c.b16 %v258, %v257
      %v266 = vpack.c.b16 %v260, %v259
      %v267 = vpack.c.b16 %v262, %v261
      %v268 = vpack.c.b16 %v264, %v263
      %v271 = vunpack.c.l.b16 %v246
      %v272 = vunpack.c.l.b16 %v247
      %v273 = vpack.c.b16 %v272, %v271
      %vm275 = vcmask 130048
      %v277 = vsel %vm275, %v265, 0
      %v280 = vsel %vm275, %v266, 0
      %v283 = vsel %vm275, %v267, 0
      %v286 = vsel %vm275, %v268, 0
      %288 = vmatprep.subr.bf16.mxu0 0
      %289 = vmatpush1.bf16.msra.mxu0 %v273
      %290 = vmatprep.subr.bf16.mxu0 0
      %291 = vmatpush1.bf16.msra.mxu0 0
      %292 = vmatprep.subr.bf16.mxu0 0
      %293 = vmatpush1.bf16.msra.mxu0 0
      %294 = vmatprep.subr.bf16.mxu0 0
      %295 = vmatpush1.bf16.msra.mxu0 0
      %296 = vmatprep.subr.bf16.mxu0 0
      %297 = vmatpush1.bf16.msra.mxu0 0
      %298 = vmatprep.subr.bf16.mxu0 0
      %299 = vmatpush1.bf16.msra.mxu0 0
      %300 = vmatprep.subr.bf16.mxu0 0
      %301 = vmatpush1.bf16.msra.mxu0 0
      %302 = vmatprep.subr.bf16.mxu0 0
      %303 = vmatpush1.bf16.msra.mxu0 0
      %304 = vmatprep.subr.bf16.mxu0 0
      %305 = vmatpush1.bf16.msra.mxu0 0
      %306 = vmatprep.subr.bf16.mxu0 0
      %307 = vmatpush1.bf16.msra.mxu0 0
      %308 = vmatprep.subr.bf16.mxu0 0
      %309 = vmatpush1.bf16.msra.mxu0 0
      %310 = vmatprep.subr.bf16.mxu0 0
      %311 = vmatpush1.bf16.msra.mxu0 0
      %312 = vmatprep.subr.bf16.mxu0 0
      %313 = vmatpush1.bf16.msra.mxu0 0
      %314 = vmatprep.subr.bf16.mxu0 0
      %315 = vmatpush1.bf16.msra.mxu0 0
      %316 = vmatprep.subr.bf16.mxu0 0
      %317 = vmatpush1.bf16.msra.mxu0 0
      %318 = vmatprep.subr.bf16.mxu0 0
      %319 = vmatpush1.bf16.msra.mxu0 0
      %320 = vmatprep.mubr.bf16.mxu0 0
      %321 = vmatmul.mubr.bf16.gmra.mrb[0].mxu0 %v277
      %v322 = vpop.f32.mrb[0].mxu0
      %v323 = vadd.f32 0.0, %v322
      %v324 = vpop.f32.mrb[0].mxu0
      %v325 = vpop.f32.mrb[0].mxu0
      %v326 = vadd.f32 0.0, %v325
      %v327 = vpop.f32.mrb[0].mxu0
      %328 = vmatprep.mubr.bf16.mxu0 0
      %329 = vmatmul.mubr.bf16.gmra.mrb[0].mxu0 %v280
      %v330 = vpop.f32.mrb[0].mxu0
      %v331 = vadd.f32 0.0, %v330
      %v332 = vpop.f32.mrb[0].mxu0
      %v333 = vpop.f32.mrb[0].mxu0
      %v334 = vadd.f32 0.0, %v333
      %v335 = vpop.f32.mrb[0].mxu0
      %336 = vmatprep.mubr.bf16.mxu0 0
      %337 = vmatmul.mubr.bf16.gmra.mrb[0].mxu0 %v283
      %v338 = vpop.f32.mrb[0].mxu0
      %v339 = vadd.f32 0.0, %v338
      %v340 = vpop.f32.mrb[0].mxu0
      %v341 = vpop.f32.mrb[0].mxu0
      %v342 = vadd.f32 0.0, %v341
      %v343 = vpop.f32.mrb[0].mxu0
      %344 = vmatprep.mubr.bf16.mxu0 0
      %345 = vmatmul.mubr.bf16.gmra.mrb[0].mxu0 %v286
      %v346 = vpop.f32.mrb[0].mxu0
      %v347 = vadd.f32 0.0, %v346
      %v348 = vpop.f32.mrb[0].mxu0
      %v349 = vpop.f32.mrb[0].mxu0
      %v350 = vadd.f32 0.0, %v349
      %v351 = vpop.f32.mrb[0].mxu0
      %352 = vdwg.mxu0
      %v353 = vlaneseq
      %v354 = vshrl.u32 %v353, 7
      %v355 = vadd.s32 %v354, 8
      %v356 = vadd.s32 %v354, 16
      %v357 = vadd.s32 %v354, 24
      %v358 = vadd.s32 %v354, 32
      %v359 = vadd.s32 %v354, 40
      %v360 = vadd.s32 %v354, 48
      %v361 = vadd.s32 %v354, 56
      %vm362 = vcmask 523264
      %v363 = vsel %vm362, %v323, -inf
      %v364 = vsel %vm362, %v326, -inf
      %v365 = vsel %vm362, %v331, -inf
      %v366 = vsel %vm362, %v334, -inf
      %v367 = vsel %vm362, %v339, -inf
      %v368 = vmax.f32 %v363, %v367
      %v369 = vsel %vm362, %v342, -inf
      %v370 = vmax.f32 %v364, %v369
      %v371 = vsel %vm362, %v347, -inf
      %v372 = vmax.f32 %v365, %v371
      %v373 = vsel %vm362, %v350, -inf
      %v374 = vmax.f32 %v366, %v373
      %v375 = vmax.f32 %v368, %v370
      %v376 = vmax.f32 %v372, %v374
      %v377 = vmax.f32 %v375, %v376
      %v378 = vrot.slane %v377, 4
      %v379 = vmax.f32 %v377, %v378
      %v380 = vrot.slane %v379, 2
      %v381 = vmax.f32 %v379, %v380
      %v382 = vrot.slane %v381, 1
      %v383 = vmax.f32 %v381, %v382
      %vm384 = vcmp.eq.f32.partialorder %v323, %v383
      %vm385 = vcmp.eq.f32.partialorder %v326, %v383
      %vm386 = vcmp.eq.f32.partialorder %v331, %v383
      %vm387 = vcmp.eq.f32.partialorder %v334, %v383
      %vm388 = vcmp.eq.f32.partialorder %v339, %v383
      %vm389 = vcmp.eq.f32.partialorder %v342, %v383
      %vm390 = vcmp.eq.f32.partialorder %v347, %v383
      %vm391 = vcmp.eq.f32.partialorder %v350, %v383
      %v392 = vsel %vm384, %v354, 64
      %v393 = vsel %vm385, %v355, 64
      %v394 = vsel %vm386, %v356, 64
      %v395 = vsel %vm387, %v357, 64
      %v396 = vsel %vm388, %v358, 64
      %v397 = vsel %vm389, %v359, 64
      %v398 = vsel %vm390, %v360, 64
      %v399 = vsel %vm391, %v361, 64
      %v400 = vsel %vm362, %v392, 2147483647
      %v401 = vsel %vm362, %v393, 2147483647
      %v402 = vsel %vm362, %v394, 2147483647
      %v403 = vsel %vm362, %v395, 2147483647
      %v404 = vsel %vm362, %v396, 2147483647
      %vm405 = vcmp.lt.s32.totalorder %v400, %v404
      %v406 = vsel %vm405, %v400, %v404
      %v407 = vsel %vm362, %v397, 2147483647
      %vm408 = vcmp.lt.s32.totalorder %v401, %v407
      %v409 = vsel %vm408, %v401, %v407
      %v410 = vsel %vm362, %v398, 2147483647
      %vm411 = vcmp.lt.s32.totalorder %v402, %v410
      %v412 = vsel %vm411, %v402, %v410
      %v413 = vsel %vm362, %v399, 2147483647
      %vm414 = vcmp.lt.s32.totalorder %v403, %v413
      %v415 = vsel %vm414, %v403, %v413
      %vm416 = vcmp.lt.s32.totalorder %v406, %v409
      %v417 = vsel %vm416, %v406, %v409
      %vm418 = vcmp.lt.s32.totalorder %v412, %v415
      %v419 = vsel %vm418, %v412, %v415
      %vm420 = vcmp.lt.s32.totalorder %v417, %v419
      %v421 = vsel %vm420, %v417, %v419
      %v422 = vrot.slane %v421, 4
      %vm423 = vcmp.lt.s32.totalorder %v421, %v422
      %v424 = vsel %vm423, %v421, %v422
      %v425 = vrot.slane %v424, 2
      %vm426 = vcmp.lt.s32.totalorder %v424, %v425
      %v427 = vsel %vm426, %v424, %v425
      %v428 = vrot.slane %v427, 1
      %vm429 = vcmp.lt.s32.totalorder %v427, %v428
      %v430 = vsel %vm429, %v427, %v428
      %vm431 = vcmp.eq.s32.totalorder %v354, %v430
      %vm432 = vcmp.eq.s32.totalorder %v355, %v430
      %vm433 = vcmp.eq.s32.totalorder %v356, %v430
      %vm434 = vcmp.eq.s32.totalorder %v357, %v430
      %vm435 = vcmp.eq.s32.totalorder %v358, %v430
      %vm436 = vcmp.eq.s32.totalorder %v359, %v430
      %vm437 = vcmp.eq.s32.totalorder %v360, %v430
      %vm438 = vcmp.eq.s32.totalorder %v361, %v430
      %v439 = vsel %vm431, 1.0, 0.0
      %v440 = vsel %vm432, 1.0, 0.0
      %v441 = vsel %vm433, 1.0, 0.0
      %v442 = vsel %vm434, 1.0, 0.0
      %v443 = vsel %vm435, 1.0, 0.0
      %v444 = vsel %vm436, 1.0, 0.0
      %v445 = vsel %vm437, 1.0, 0.0
      %v446 = vsel %vm438, 1.0, 0.0
      %v447 = vsel %vm431, -1e+30, %v323
      %v448 = vsel %vm432, -1e+30, %v326
      %v449 = vsel %vm433, -1e+30, %v331
      %v450 = vsel %vm434, -1e+30, %v334
      %v451 = vsel %vm435, -1e+30, %v339
      %v452 = vsel %vm436, -1e+30, %v342
      %v453 = vsel %vm437, -1e+30, %v347
      %v454 = vsel %vm438, -1e+30, %v350
      %v455 = vsel %vm362, %v447, -inf
      %v456 = vsel %vm362, %v448, -inf
      %v457 = vsel %vm362, %v449, -inf
      %v458 = vsel %vm362, %v450, -inf
      %v459 = vsel %vm362, %v451, -inf
      %v460 = vmax.f32 %v455, %v459
      %v461 = vsel %vm362, %v452, -inf
      %v462 = vmax.f32 %v456, %v461
      %v463 = vsel %vm362, %v453, -inf
      %v464 = vmax.f32 %v457, %v463
      %v465 = vsel %vm362, %v454, -inf
      %v466 = vmax.f32 %v458, %v465
      %v467 = vmax.f32 %v460, %v462
      %v468 = vmax.f32 %v464, %v466
      %v469 = vmax.f32 %v467, %v468
      %v470 = vrot.slane %v469, 4
      %v471 = vmax.f32 %v469, %v470
      %v472 = vrot.slane %v471, 2
      %v473 = vmax.f32 %v471, %v472
      %v474 = vrot.slane %v473, 1
      %v475 = vmax.f32 %v473, %v474
      %vm476 = vcmp.eq.f32.partialorder %v447, %v475
      %vm477 = vcmp.eq.f32.partialorder %v448, %v475
      %vm478 = vcmp.eq.f32.partialorder %v449, %v475
      %vm479 = vcmp.eq.f32.partialorder %v450, %v475
      %vm480 = vcmp.eq.f32.partialorder %v451, %v475
      %vm481 = vcmp.eq.f32.partialorder %v452, %v475
      %vm482 = vcmp.eq.f32.partialorder %v453, %v475
      %vm483 = vcmp.eq.f32.partialorder %v454, %v475
      %v484 = vsel %vm476, %v354, 64
      %v485 = vsel %vm477, %v355, 64
      %v486 = vsel %vm478, %v356, 64
      %v487 = vsel %vm479, %v357, 64
      %v488 = vsel %vm480, %v358, 64
      %v489 = vsel %vm481, %v359, 64
      %v490 = vsel %vm482, %v360, 64
      %v491 = vsel %vm483, %v361, 64
      %v492 = vsel %vm362, %v484, 2147483647
      %v493 = vsel %vm362, %v485, 2147483647
      %v494 = vsel %vm362, %v486, 2147483647
      %v495 = vsel %vm362, %v487, 2147483647
      %v496 = vsel %vm362, %v488, 2147483647
      %vm497 = vcmp.lt.s32.totalorder %v492, %v496
      %v498 = vsel %vm497, %v492, %v496
      %v499 = vsel %vm362, %v489, 2147483647
      %vm500 = vcmp.lt.s32.totalorder %v493, %v499
      %v501 = vsel %vm500, %v493, %v499
      %v502 = vsel %vm362, %v490, 2147483647
      %vm503 = vcmp.lt.s32.totalorder %v494, %v502
      %v504 = vsel %vm503, %v494, %v502
      %v505 = vsel %vm362, %v491, 2147483647
      %vm506 = vcmp.lt.s32.totalorder %v495, %v505
      %v507 = vsel %vm506, %v495, %v505
      %vm508 = vcmp.lt.s32.totalorder %v498, %v501
      %v509 = vsel %vm508, %v498, %v501
      %vm510 = vcmp.lt.s32.totalorder %v504, %v507
      %v511 = vsel %vm510, %v504, %v507
      %vm512 = vcmp.lt.s32.totalorder %v509, %v511
      %v513 = vsel %vm512, %v509, %v511
      %v514 = vrot.slane %v513, 4
      %vm515 = vcmp.lt.s32.totalorder %v513, %v514
      %v516 = vsel %vm515, %v513, %v514
      %v517 = vrot.slane %v516, 2
      %vm518 = vcmp.lt.s32.totalorder %v516, %v517
      %v519 = vsel %vm518, %v516, %v517
      %v520 = vrot.slane %v519, 1
      %vm521 = vcmp.lt.s32.totalorder %v519, %v520
      %v522 = vsel %vm521, %v519, %v520
      %vm523 = vcmp.eq.s32.totalorder %v354, %v522
      %vm524 = vcmp.eq.s32.totalorder %v355, %v522
      %vm525 = vcmp.eq.s32.totalorder %v356, %v522
      %vm526 = vcmp.eq.s32.totalorder %v357, %v522
      %vm527 = vcmp.eq.s32.totalorder %v358, %v522
      %vm528 = vcmp.eq.s32.totalorder %v359, %v522
      %vm529 = vcmp.eq.s32.totalorder %v360, %v522
      %vm530 = vcmp.eq.s32.totalorder %v361, %v522
      %v531 = vsel %vm523, 1.0, %v439
      %v532 = vsel %vm524, 1.0, %v440
      %v533 = vsel %vm525, 1.0, %v441
      %v534 = vsel %vm526, 1.0, %v442
      %v535 = vsel %vm527, 1.0, %v443
      %v536 = vsel %vm528, 1.0, %v444
      %v537 = vsel %vm529, 1.0, %v445
      %v538 = vsel %vm530, 1.0, %v446
      %v539 = vsel %vm523, -1e+30, %v447
      %v540 = vsel %vm524, -1e+30, %v448
      %v541 = vsel %vm525, -1e+30, %v449
      %v542 = vsel %vm526, -1e+30, %v450
      %v543 = vsel %vm527, -1e+30, %v451
      %v544 = vsel %vm528, -1e+30, %v452
      %v545 = vsel %vm529, -1e+30, %v453
      %v546 = vsel %vm530, -1e+30, %v454
      %v547 = vsel %vm362, %v539, -inf
      %v548 = vsel %vm362, %v540, -inf
      %v549 = vsel %vm362, %v541, -inf
      %v550 = vsel %vm362, %v542, -inf
      %v551 = vsel %vm362, %v543, -inf
      %v552 = vmax.f32 %v547, %v551
      %v553 = vsel %vm362, %v544, -inf
      %v554 = vmax.f32 %v548, %v553
      %v555 = vsel %vm362, %v545, -inf
      %v556 = vmax.f32 %v549, %v555
      %v557 = vsel %vm362, %v546, -inf
      %v558 = vmax.f32 %v550, %v557
      %v559 = vmax.f32 %v552, %v554
      %v560 = vmax.f32 %v556, %v558
      %v561 = vmax.f32 %v559, %v560
      %v562 = vrot.slane %v561, 4
      %v563 = vmax.f32 %v561, %v562
      %v564 = vrot.slane %v563, 2
      %v565 = vmax.f32 %v563, %v564
      %v566 = vrot.slane %v565, 1
      %v567 = vmax.f32 %v565, %v566
      %vm568 = vcmp.eq.f32.partialorder %v539, %v567
      %vm569 = vcmp.eq.f32.partialorder %v540, %v567
      %vm570 = vcmp.eq.f32.partialorder %v541, %v567
      %vm571 = vcmp.eq.f32.partialorder %v542, %v567
      %vm572 = vcmp.eq.f32.partialorder %v543, %v567
      %vm573 = vcmp.eq.f32.partialorder %v544, %v567
      %vm574 = vcmp.eq.f32.partialorder %v545, %v567
      %vm575 = vcmp.eq.f32.partialorder %v546, %v567
      %v576 = vsel %vm568, %v354, 64
      %v577 = vsel %vm569, %v355, 64
      %v578 = vsel %vm570, %v356, 64
      %v579 = vsel %vm571, %v357, 64
      %v580 = vsel %vm572, %v358, 64
      %v581 = vsel %vm573, %v359, 64
      %v582 = vsel %vm574, %v360, 64
      %v583 = vsel %vm575, %v361, 64
      %v584 = vsel %vm362, %v576, 2147483647
      %v585 = vsel %vm362, %v577, 2147483647
      %v586 = vsel %vm362, %v578, 2147483647
      %v587 = vsel %vm362, %v579, 2147483647
      %v588 = vsel %vm362, %v580, 2147483647
      %vm589 = vcmp.lt.s32.totalorder %v584, %v588
      %v590 = vsel %vm589, %v584, %v588
      %v591 = vsel %vm362, %v581, 2147483647
      %vm592 = vcmp.lt.s32.totalorder %v585, %v591
      %v593 = vsel %vm592, %v585, %v591
      %v594 = vsel %vm362, %v582, 2147483647
      %vm595 = vcmp.lt.s32.totalorder %v586, %v594
      %v596 = vsel %vm595, %v586, %v594
      %v597 = vsel %vm362, %v583, 2147483647
      %vm598 = vcmp.lt.s32.totalorder %v587, %v597
      %v599 = vsel %vm598, %v587, %v597
      %vm600 = vcmp.lt.s32.totalorder %v590, %v593
      %v601 = vsel %vm600, %v590, %v593
      %vm602 = vcmp.lt.s32.totalorder %v596, %v599
      %v603 = vsel %vm602, %v596, %v599
      %vm604 = vcmp.lt.s32.totalorder %v601, %v603
      %v605 = vsel %vm604, %v601, %v603
      %v606 = vrot.slane %v605, 4
      %vm607 = vcmp.lt.s32.totalorder %v605, %v606
      %v608 = vsel %vm607, %v605, %v606
      %v609 = vrot.slane %v608, 2
      %vm610 = vcmp.lt.s32.totalorder %v608, %v609
      %v611 = vsel %vm610, %v608, %v609
      %v612 = vrot.slane %v611, 1
      %vm613 = vcmp.lt.s32.totalorder %v611, %v612
      %v614 = vsel %vm613, %v611, %v612
      %vm615 = vcmp.eq.s32.totalorder %v354, %v614
      %vm616 = vcmp.eq.s32.totalorder %v355, %v614
      %vm617 = vcmp.eq.s32.totalorder %v356, %v614
      %vm618 = vcmp.eq.s32.totalorder %v357, %v614
      %vm619 = vcmp.eq.s32.totalorder %v358, %v614
      %vm620 = vcmp.eq.s32.totalorder %v359, %v614
      %vm621 = vcmp.eq.s32.totalorder %v360, %v614
      %vm622 = vcmp.eq.s32.totalorder %v361, %v614
      %v623 = vsel %vm615, 1.0, %v531
      %v624 = vsel %vm616, 1.0, %v532
      %v625 = vsel %vm617, 1.0, %v533
      %v626 = vsel %vm618, 1.0, %v534
      %v627 = vsel %vm619, 1.0, %v535
      %v628 = vsel %vm620, 1.0, %v536
      %v629 = vsel %vm621, 1.0, %v537
      %v630 = vsel %vm622, 1.0, %v538
      %v631 = vsel %vm615, -1e+30, %v539
      %v632 = vsel %vm616, -1e+30, %v540
      %v633 = vsel %vm617, -1e+30, %v541
      %v634 = vsel %vm618, -1e+30, %v542
      %v635 = vsel %vm619, -1e+30, %v543
      %v636 = vsel %vm620, -1e+30, %v544
      %v637 = vsel %vm621, -1e+30, %v545
      %v638 = vsel %vm622, -1e+30, %v546
      %v639 = vsel %vm362, %v631, -inf
      %v640 = vsel %vm362, %v632, -inf
      %v641 = vsel %vm362, %v633, -inf
      %v642 = vsel %vm362, %v634, -inf
      %v643 = vsel %vm362, %v635, -inf
      %v644 = vmax.f32 %v639, %v643
      %v645 = vsel %vm362, %v636, -inf
      %v646 = vmax.f32 %v640, %v645
      %v647 = vsel %vm362, %v637, -inf
      %v648 = vmax.f32 %v641, %v647
      %v649 = vsel %vm362, %v638, -inf
      %v650 = vmax.f32 %v642, %v649
      %v651 = vmax.f32 %v644, %v646
      %v652 = vmax.f32 %v648, %v650
      %v653 = vmax.f32 %v651, %v652
      %v654 = vrot.slane %v653, 4
      %v655 = vmax.f32 %v653, %v654
      %v656 = vrot.slane %v655, 2
      %v657 = vmax.f32 %v655, %v656
      %v658 = vrot.slane %v657, 1
      %v659 = vmax.f32 %v657, %v658
      %vm660 = vcmp.eq.f32.partialorder %v631, %v659
      %vm661 = vcmp.eq.f32.partialorder %v632, %v659
      %vm662 = vcmp.eq.f32.partialorder %v633, %v659
      %vm663 = vcmp.eq.f32.partialorder %v634, %v659
      %vm664 = vcmp.eq.f32.partialorder %v635, %v659
      %vm665 = vcmp.eq.f32.partialorder %v636, %v659
      %vm666 = vcmp.eq.f32.partialorder %v637, %v659
      %vm667 = vcmp.eq.f32.partialorder %v638, %v659
      %v668 = vsel %vm660, %v354, 64
      %v669 = vsel %vm661, %v355, 64
      %v670 = vsel %vm662, %v356, 64
      %v671 = vsel %vm663, %v357, 64
      %v672 = vsel %vm664, %v358, 64
      %v673 = vsel %vm665, %v359, 64
      %v674 = vsel %vm666, %v360, 64
      %v675 = vsel %vm667, %v361, 64
      %v676 = vsel %vm362, %v668, 2147483647
      %v677 = vsel %vm362, %v669, 2147483647
      %v678 = vsel %vm362, %v670, 2147483647
      %v679 = vsel %vm362, %v671, 2147483647
      %v680 = vsel %vm362, %v672, 2147483647
      %vm681 = vcmp.lt.s32.totalorder %v676, %v680
      %v682 = vsel %vm681, %v676, %v680
      %v683 = vsel %vm362, %v673, 2147483647
      %vm684 = vcmp.lt.s32.totalorder %v677, %v683
      %v685 = vsel %vm684, %v677, %v683
      %v686 = vsel %vm362, %v674, 2147483647
      %vm687 = vcmp.lt.s32.totalorder %v678, %v686
      %v688 = vsel %vm687, %v678, %v686
      %v689 = vsel %vm362, %v675, 2147483647
      %vm690 = vcmp.lt.s32.totalorder %v679, %v689
      %v691 = vsel %vm690, %v679, %v689
      %vm692 = vcmp.lt.s32.totalorder %v682, %v685
      %v693 = vsel %vm692, %v682, %v685
      %vm694 = vcmp.lt.s32.totalorder %v688, %v691
      %v695 = vsel %vm694, %v688, %v691
      %vm696 = vcmp.lt.s32.totalorder %v693, %v695
      %v697 = vsel %vm696, %v693, %v695
      %v698 = vrot.slane %v697, 4
      %vm699 = vcmp.lt.s32.totalorder %v697, %v698
      %v700 = vsel %vm699, %v697, %v698
      %v701 = vrot.slane %v700, 2
      %vm702 = vcmp.lt.s32.totalorder %v700, %v701
      %v703 = vsel %vm702, %v700, %v701
      %v704 = vrot.slane %v703, 1
      %vm705 = vcmp.lt.s32.totalorder %v703, %v704
      %v706 = vsel %vm705, %v703, %v704
      %vm707 = vcmp.eq.s32.totalorder %v354, %v706
      %vm708 = vcmp.eq.s32.totalorder %v355, %v706
      %vm709 = vcmp.eq.s32.totalorder %v356, %v706
      %vm710 = vcmp.eq.s32.totalorder %v357, %v706
      %vm711 = vcmp.eq.s32.totalorder %v358, %v706
      %vm712 = vcmp.eq.s32.totalorder %v359, %v706
      %vm713 = vcmp.eq.s32.totalorder %v360, %v706
      %vm714 = vcmp.eq.s32.totalorder %v361, %v706
      %v715 = vsel %vm707, 1.0, %v623
      %v716 = vsel %vm708, 1.0, %v624
      %v717 = vsel %vm709, 1.0, %v625
      %v718 = vsel %vm710, 1.0, %v626
      %v719 = vsel %vm711, 1.0, %v627
      %v720 = vsel %vm712, 1.0, %v628
      %v721 = vsel %vm713, 1.0, %v629
      %v722 = vsel %vm714, 1.0, %v630
      %v723 = vmul.f32 %v715, %v323
      %v724 = vmul.f32 %v716, %v326
      %v725 = vmul.f32 %v717, %v331
      %v726 = vmul.f32 %v718, %v334
      %v727 = vmul.f32 %v719, %v339
      %v728 = vmul.f32 %v720, %v342
      %v729 = vmul.f32 %v721, %v347
      %v730 = vmul.f32 %v722, %v350
      %v732 = vsel %vm362, %v248, 0
      %734 = vmatprep.subr.mxu0 0.0
      %735 = vmatpush1.msra.mxu0 %v723
      %736 = vmatprep.subr.mxu0 0.0
      %737 = vmatpush1.msra.mxu0 %v724
      %738 = vmatprep.subr.mxu0 0.0
      %739 = vmatpush1.msra.mxu0 %v725
      %740 = vmatprep.subr.mxu0 0.0
      %741 = vmatpush1.msra.mxu0 %v726
      %742 = vmatprep.subr.mxu0 0.0
      %743 = vmatpush1.msra.mxu0 %v727
      %744 = vmatprep.subr.mxu0 0.0
      %745 = vmatpush1.msra.mxu0 %v728
      %746 = vmatprep.subr.mxu0 0.0
      %747 = vmatpush1.msra.mxu0 %v729
      %748 = vmatprep.subr.mxu0 0.0
      %749 = vmatpush1.msra.mxu0 %v730
      %750 = vmatprep.subr.mxu0 0.0
      %751 = vmatpush1.msra.mxu0 0.0
      %752 = vmatprep.subr.mxu0 0.0
      %753 = vmatpush1.msra.mxu0 0.0
      %754 = vmatprep.subr.mxu0 0.0
      %755 = vmatpush1.msra.mxu0 0.0
      %756 = vmatprep.subr.mxu0 0.0
      %757 = vmatpush1.msra.mxu0 0.0
      %758 = vmatprep.subr.mxu0 0.0
      %759 = vmatpush1.msra.mxu0 0.0
      %760 = vmatprep.subr.mxu0 0.0
      %761 = vmatpush1.msra.mxu0 0.0
      %762 = vmatprep.subr.mxu0 0.0
      %763 = vmatpush1.msra.mxu0 0.0
      %764 = vmatprep.subr.mxu0 0.0
      %765 = vmatpush1.msra.mxu0 0.0
      %766 = vmatprep.subr.mxu0 0.0
      %767 = vmatpush1.msra.mxu0 0.0
      %768 = vmatprep.subr.mxu0 0.0
      %769 = vmatpush1.msra.mxu0 0.0
      %770 = vmatprep.subr.mxu0 0.0
      %771 = vmatpush1.msra.mxu0 0.0
      %772 = vmatprep.subr.mxu0 0.0
      %773 = vmatpush1.msra.mxu0 0.0
      %774 = vmatprep.subr.mxu0 0.0
      %775 = vmatpush1.msra.mxu0 0.0
      %776 = vmatprep.subr.mxu0 0.0
      %777 = vmatpush1.msra.mxu0 0.0
      %778 = vmatprep.subr.mxu0 0.0
      %779 = vmatpush1.msra.mxu0 0.0
      %780 = vmatprep.subr.mxu0 0.0
      %781 = vmatpush1.msra.mxu0 0.0
      %782 = vmatprep.subr.mxu0 0.0
      %783 = vmatpush1.msra.mxu0 0.0
      %784 = vmatprep.subr.mxu0 0.0
      %785 = vmatpush1.msra.mxu0 0.0
      %786 = vmatprep.subr.mxu0 0.0
      %787 = vmatpush1.msra.mxu0 0.0
      %788 = vmatprep.subr.mxu0 0.0
      %789 = vmatpush1.msra.mxu0 0.0
      %790 = vmatprep.subr.mxu0 0.0
      %791 = vmatpush1.msra.mxu0 0.0
      %792 = vmatprep.subr.mxu0 0.0
      %793 = vmatpush1.msra.mxu0 0.0
      %794 = vmatprep.subr.mxu0 0.0
      %795 = vmatpush1.msra.mxu0 0.0
      %796 = vmatprep.subr.mxu0 0.0
      %797 = vmatpush1.msra.mxu0 0.0
      %798 = vmatprep.mubr.f32.mxu0 0.0
      %799 = vmatmul.mubr.f32.gmra.mrb[0].mxu0 %v732
      %v800 = vpop.f32.mrb[0].mxu0
      %v801 = vadd.f32 0.0, %v800
      %v802 = vpop.f32.mrb[0].mxu0
      %803 = vdwg.mxu0
      %vm804 = vcmask 520192
      %805 = vst.msk [vmem:[%s236] sm:$0x1f] %vm804, %v801
      %p806 = scmp.lt.s32.totalorder %s18, 3
      %s807 = scalar_select %p806, %s18, 3
      %p808 = scmp.lt.s32.totalorder %s19, 0
      %s809 = scalar_select %p808, %s19, 0
      %s810 = sadd.s32 %s809, %s807
      %s811 = smul.addr %s810, 8
      %s812 = scalar_lea.vmem %s3, %s811
      // Predicated region
      $region33: #{spnet_forward.9} parent=31 // pred_check
        %p813 = pneg %p126
      $region34: #{spnet_forward.9} parent=31 // pred_check_branch
        %815 = sbr.rel (%p813) target = $region36
      $region35: #{spnet_forward.9} parent=31 // pred_region
        _
      $region36: #{spnet_forward.9} parent=31 // pred_fallthru
        _
    $region32: #{spnet_forward.9} parent=5 // pred_fallthru
      _
    %p816 = scmp.le.s32.totalorder 2, %s9
    // Predicated region
    $region37: #{spnet_forward.9} parent=5 // pred_check
      %p817 = pneg %p816
    $region38: #{spnet_forward.9} parent=5 // pred_check_branch
      %819 = sbr.rel (%p817) target = $region40
    $region39: #{spnet_forward.9} parent=5 // pred_region
      %s820 = ssub.s32 %s9, 2
      // Predicated region
      $region41: #{spnet_forward.9} parent=39 // pred_check
        %p821 = pneg %p132
      $region42: #{spnet_forward.9} parent=39 // pred_check_branch
        %823 = sbr.rel (%p821) target = $region44
      $region43: #{spnet_forward.9} parent=39 // pred_region
        %p824 = scmp.lt.s32.totalorder %s20, 3
        %s825 = scalar_select %p824, %s20, 3
        %p826 = scmp.lt.s32.totalorder %s21, 0
        %s827 = scalar_select %p826, %s21, 0
        %s828 = sadd.s32 %s827, %s825
        %s829 = smul.addr %s828, 8
        %s830 = scalar_lea.vmem %s3, %s829
      $region44: #{spnet_forward.9} parent=39 // pred_fallthru
        _
    $region40: #{spnet_forward.9} parent=5 // pred_fallthru
      _
  $region6: #{spnet_forward.9} parent=0 // loop_footer
    %s13 = sadd.s32 1, %s9
  $region7: #{spnet_forward.9} parent=0 // loop_footer_branch
    %8 = sbr.rel target = $region3
  $region8: #{spnet_forward.9} parent=0 // loop_exit
    _

</llo_original>
